<compile_context>
chip_gen: v6e
topology: v6e:2x2x1
jax: 0.10.0
libtpu: 0.0.40
codegen_flags: <defaults>
</compile_context>

<pallas_src>
import functools
import numpy as np

import jax
import jax.numpy as jnp
from jax.experimental import pallas as pl
from jax.experimental.pallas import tpu as pltpu

LN_EPS = 1e-5


def _round_up(x, m):
    return ((x + m - 1) // m) * m


def _pad_rows(x, target_rows):
    m = x.shape[0]
    if m == target_rows:
        return x
    pad = jnp.zeros((target_rows - m,) + x.shape[1:], x.dtype)
    return jnp.concatenate([x, pad], axis=0)


# --------------------------------------------------------------------------
# Row-tiled linear
# --------------------------------------------------------------------------
def _linear_kernel(x_ref, w_ref, b_ref, o_ref):
    x = x_ref[...].astype(jnp.bfloat16)
    o_ref[...] = (
        jnp.dot(x, w_ref[...], preferred_element_type=jnp.float32) + b_ref[...]
    )


def pallas_linear(x, w, b, *, tm=256):
    M, K = x.shape
    N = w.shape[1]
    tm = min(tm, _round_up(M, 8))
    Mp = _round_up(M, tm)
    xp = _pad_rows(x.astype(jnp.float32), Mp)
    out = pl.pallas_call(
        _linear_kernel,
        out_shape=jax.ShapeDtypeStruct((Mp, N), jnp.float32),
        grid=(Mp // tm,),
        in_specs=[
            pl.BlockSpec((tm, K), lambda i: (i, 0)),
            pl.BlockSpec((K, N), lambda i: (0, 0)),
            pl.BlockSpec((1, N), lambda i: (0, 0)),
        ],
        out_specs=pl.BlockSpec((tm, N), lambda i: (i, 0)),
        compiler_params=pltpu.CompilerParams(
            dimension_semantics=("parallel",),
            vmem_limit_bytes=32 * 1024 * 1024,
        ),
    )(xp, w.astype(jnp.bfloat16), b.reshape(1, N).astype(jnp.float32))
    return out[:M]


# --------------------------------------------------------------------------
# Self-attention block (pre-norm), one batch element per grid step.
# Key-padding mask built in-kernel from scalar-prefetched lengths.
# --------------------------------------------------------------------------
def _self_attn_kernel(lens_ref, x_ref, pos_ref, *rest, n_heads, has_mask):
    if has_mask:
        mask_ref, wqk_ref, wv_ref, wo_ref, g_ref, beta_ref, o_ref = rest
    else:
        wqk_ref, wv_ref, wo_ref, g_ref, beta_ref, o_ref = rest
        mask_ref = None

    b = pl.program_id(0)
    x = x_ref[0]        # (S, D)
    pos = pos_ref[0]    # (S, D)
    S, D = x.shape

    mu = jnp.mean(x, axis=-1, keepdims=True)
    var = jnp.mean((x - mu) ** 2, axis=-1, keepdims=True)
    xn = (x - mu) * jax.lax.rsqrt(var + LN_EPS) * g_ref[...] + beta_ref[...]

    qk_in = (xn + pos).astype(jnp.bfloat16)
    qk = jnp.dot(qk_in, wqk_ref[...], preferred_element_type=jnp.float32)  # (S, 2D)
    q = qk[:, :D]
    k = qk[:, D:]
    v = jnp.dot(xn.astype(jnp.bfloat16), wv_ref[...],
                preferred_element_type=jnp.float32)

    dh = D // n_heads
    scale = 1.0 / float(np.sqrt(dh))

    col = jax.lax.broadcasted_iota(jnp.int32, (S, S), 1)
    add_mask = jnp.where(col < lens_ref[b], 0.0, -1e9).astype(jnp.float32)
    if has_mask:
        add_mask = add_mask + mask_ref[0]

    head_outs = []
    for h in range(n_heads):
        qh = q[:, h * dh:(h + 1) * dh].astype(jnp.bfloat16)
        kh = k[:, h * dh:(h + 1) * dh].astype(jnp.bfloat16)
        vh = v[:, h * dh:(h + 1) * dh].astype(jnp.bfloat16)
        s = jax.lax.dot_general(qh, kh, (((1,), (1,)), ((), ())),
                                preferred_element_type=jnp.float32)
        s = s * scale + add_mask
        s = s - jnp.max(s, axis=-1, keepdims=True)
        p = jnp.exp(s)
        p = p * pl.reciprocal(jnp.sum(p, axis=-1, keepdims=True), approx=True)
        head_outs.append(jnp.dot(p.astype(jnp.bfloat16), vh,
                                 preferred_element_type=jnp.float32))

    # Single full-K output projection (instead of n_heads K=dh matmuls).
    heads_cat = jnp.concatenate(head_outs, axis=-1).astype(jnp.bfloat16)
    attn = jnp.dot(heads_cat, wo_ref[...], preferred_element_type=jnp.float32)
    o_ref[0] = x + attn


def pallas_self_attention(x_pad, pos_pad, lens, p, n_heads, attn_mask=None):
    B, S, D = x_pad.shape
    wqk = jnp.concatenate([p["wq"], p["wk"]], axis=1).astype(jnp.bfloat16)
    wv = p["wv"].astype(jnp.bfloat16)
    wo = p["wo"].astype(jnp.bfloat16)
    has_mask = attn_mask is not None

    kernel = functools.partial(_self_attn_kernel, n_heads=n_heads,
                               has_mask=has_mask)

    in_specs = [
        pl.BlockSpec((1, S, D), lambda b, L: (b, 0, 0)),
        pl.BlockSpec((1, S, D), lambda b, L: (b, 0, 0)),
    ]
    args = [x_pad, pos_pad]
    if has_mask:
        in_specs.append(pl.BlockSpec((1, S, S), lambda b, L: (b, 0, 0)))
        args.append(attn_mask.astype(jnp.float32))
    in_specs += [
        pl.BlockSpec((D, 2 * D), lambda b, L: (0, 0)),
        pl.BlockSpec((D, D), lambda b, L: (0, 0)),
        pl.BlockSpec((D, D), lambda b, L: (0, 0)),
        pl.BlockSpec((1, D), lambda b, L: (0, 0)),
        pl.BlockSpec((1, D), lambda b, L: (0, 0)),
    ]
    args += [wqk, wv, wo, p["ln_g"].reshape(1, D), p["ln_b"].reshape(1, D)]

    return pl.pallas_call(
        kernel,
        out_shape=jax.ShapeDtypeStruct((B, S, D), jnp.float32),
        grid_spec=pltpu.PrefetchScalarGridSpec(
            num_scalar_prefetch=1,
            grid=(B,),
            in_specs=in_specs,
            out_specs=pl.BlockSpec((1, S, D), lambda b, L: (b, 0, 0)),
        ),
        compiler_params=pltpu.CompilerParams(dimension_semantics=("parallel",)),
    )(lens, *args)


def self_attention_block(x, pos, batch_offsets_np, p, n_heads, attn_mask=None):
    N, D = x.shape
    B = len(batch_offsets_np)
    bounds = np.concatenate([batch_offsets_np, [N]]).astype(np.int64)
    counts = np.diff(bounds).astype(np.int64)
    S = max(8, int(_round_up(int(counts.max()), 8)))

    # Static index tables (host numpy); the actual data movement is 2 gathers.
    pad_idx = np.full((B, S), N, np.int32)
    for b in range(B):
        c = int(counts[b])
        pad_idx[b, :c] = int(bounds[b]) + np.arange(c)
    unpad_idx = np.concatenate(
        [b * S + np.arange(int(counts[b])) for b in range(B)]).astype(np.int32)

    zero_row = jnp.zeros((1, D), jnp.float32)
    pad_idx_j = jnp.asarray(pad_idx)
    x_pad = jnp.concatenate([x, zero_row], axis=0)[pad_idx_j]
    pos_pad = jnp.concatenate([pos, zero_row], axis=0)[pad_idx_j]
    lens = jnp.asarray(counts, jnp.int32)

    mask_pad = None
    if attn_mask is not None:
        # Expected as an additive broadcastable (B, S, S) float mask.
        mask_pad = jnp.asarray(attn_mask, jnp.float32)

    out_pad = pallas_self_attention(x_pad, pos_pad, lens, p, n_heads, mask_pad)
    return out_pad.reshape(B * S, D)[jnp.asarray(unpad_idx)]


# --------------------------------------------------------------------------
# MS-deformable cross attention
# --------------------------------------------------------------------------
def _ca_prework_kernel(x_ref, pos_ref, g_ref, beta_ref, w_ref, bias_ref,
                       off_ref, aw_ref, *, n_heads, lp, off_dim):
    # LayerNorm + (q = xn + pos) + fused [Woff | Waw] matmul + per-head softmax.
    x = x_ref[...]
    mu = jnp.mean(x, axis=-1, keepdims=True)
    var = jnp.mean((x - mu) ** 2, axis=-1, keepdims=True)
    xn = (x - mu) * jax.lax.rsqrt(var + LN_EPS) * g_ref[...] + beta_ref[...]
    q = (xn + pos_ref[...]).astype(jnp.bfloat16)
    raw = jnp.dot(q, w_ref[...], preferred_element_type=jnp.float32) + bias_ref[...]
    off_ref[...] = raw[:, :off_dim]
    chunks = []
    for h in range(n_heads):
        c = raw[:, off_dim + h * lp: off_dim + (h + 1) * lp]
        c = c - jnp.max(c, axis=-1, keepdims=True)
        e = jnp.exp(c)
        chunks.append(e * pl.reciprocal(jnp.sum(e, axis=-1, keepdims=True),
                                        approx=True))
    aw_ref[...] = jnp.concatenate(chunks, axis=-1)


def pallas_ca_prework(x, pos, p, n_heads, n_levels, n_points, *, tm=256):
    N, D = x.shape
    lp = n_levels * n_points
    hlp = n_heads * lp
    off_dim = hlp * 2
    w_cat = jnp.concatenate([p["w_off"], p["w_aw"]], axis=1).astype(jnp.bfloat16)
    b_cat = jnp.concatenate([p["b_off"], p["b_aw"]], axis=0).reshape(1, -1)
    b_cat = b_cat.astype(jnp.float32)

    tm = min(tm, _round_up(N, 8))
    Np = _round_up(N, tm)
    xp = _pad_rows(x, Np)
    posp = _pad_rows(pos, Np)

    kernel = functools.partial(_ca_prework_kernel, n_heads=n_heads, lp=lp,
                               off_dim=off_dim)
    off, aw = pl.pallas_call(
        kernel,
        out_shape=(jax.ShapeDtypeStruct((Np, off_dim), jnp.float32),
                   jax.ShapeDtypeStruct((Np, hlp), jnp.float32)),
        grid=(Np // tm,),
        in_specs=[
            pl.BlockSpec((tm, D), lambda i: (i, 0)),
            pl.BlockSpec((tm, D), lambda i: (i, 0)),
            pl.BlockSpec((1, D), lambda i: (0, 0)),
            pl.BlockSpec((1, D), lambda i: (0, 0)),
            pl.BlockSpec((D, off_dim + hlp), lambda i: (0, 0)),
            pl.BlockSpec((1, off_dim + hlp), lambda i: (0, 0)),
        ],
        out_specs=(pl.BlockSpec((tm, off_dim), lambda i: (i, 0)),
                   pl.BlockSpec((tm, hlp), lambda i: (i, 0))),
        compiler_params=pltpu.CompilerParams(
            dimension_semantics=("parallel",),
            vmem_limit_bytes=32 * 1024 * 1024,
        ),
    )(xp, posp, p["ln_g"].reshape(1, D), p["ln_b"].reshape(1, D), w_cat, b_cat)
    return off[:N], aw[:N]


def _ms_deform_sample_raw(feat_maps, spatial_shapes, loc, aw, batch_ids):
    # Bilinear-sample RAW feature rows (value projection is applied afterwards;
    # it commutes with the interpolation).  One gather per level, all heads /
    # points / corners fused into the index arrays (full-D rows stay
    # lane-contiguous).
    # TODO(synk): data-dependent bilinear gather (grid_sample) stays in XLA
    #             glue; a Pallas DMA-gather version is future work.
    B, L, Hm, Wm, D = feat_maps.shape
    N, H, _, P, _ = loc.shape
    feat_flat = feat_maps.reshape(B, L * Hm * Wm, D)
    agg = jnp.zeros((N, H, D), jnp.float32)
    mass = jnp.zeros((N, H), jnp.float32)
    for l in range(L):
        H_l = spatial_shapes[l, 0].astype(jnp.float32)
        W_l = spatial_shapes[l, 1].astype(jnp.float32)
        xy = loc[:, :, l]                               # (N, H, P, 2)
        x = xy[..., 0] * W_l - 0.5
        y = xy[..., 1] * H_l - 0.5
        x0f = jnp.floor(x)
        y0f = jnp.floor(y)
        wx1 = x - x0f
        wy1 = y - y0f
        x0 = x0f.astype(jnp.int32)
        y0 = y0f.astype(jnp.int32)
        cx = jnp.stack([x0, x0 + 1, x0, x0 + 1], axis=-1)           # (N,H,P,4)
        cy = jnp.stack([y0, y0, y0 + 1, y0 + 1], axis=-1)
        cw = jnp.stack([(1 - wx1) * (1 - wy1), wx1 * (1 - wy1),
                        (1 - wx1) * wy1, wx1 * wy1], axis=-1)
        valid = ((cx >= 0) & (cy >= 0) &
                 (cx.astype(jnp.float32) <= W_l - 1.0) &
                 (cy.astype(jnp.float32) <= H_l - 1.0)).astype(jnp.float32)
        wv = cw * valid                                             # (N,H,P,4)
        cxc = jnp.clip(cx, 0, Wm - 1)
        cyc = jnp.clip(cy, 0, Hm - 1)
        flat_idx = l * (Hm * Wm) + cyc * Wm + cxc                   # (N,H,P,4)
        g = feat_flat[batch_ids[:, None, None, None], flat_idx]     # (N,H,P,4,D)
        w_all = wv * aw[:, :, l, :, None]                           # (N,H,P,4)
        agg = agg + jnp.einsum('nhpc,nhpcd->nhd', w_all, g)
        mass = mass + jnp.sum(w_all, axis=(2, 3))
    return agg, mass


def ms_deform_cross_attention_block(x, pos, ref_xy, batch_ids, feat_maps,
                                    spatial_shapes, p, n_heads, n_levels,
                                    n_points):
    N, D = x.shape
    residual = x

    off_raw, aw = pallas_ca_prework(x, pos, p, n_heads, n_levels, n_points)
    off = off_raw.reshape(N, n_heads, n_levels, n_points, 2)
    aw = aw.reshape(N, n_heads, n_levels, n_points)

    sp = spatial_shapes.astype(jnp.float32)
    normalizer = jnp.stack([sp[:, 1], sp[:, 0]], axis=-1)   # (W_l, H_l)
    loc = ref_xy[:, None, None, None, :] + off / normalizer[None, None, :, None, :]

    agg, mass = _ms_deform_sample_raw(feat_maps, spatial_shapes, loc, aw,
                                      batch_ids)

    # Fuse per-head value projection with the output projection:
    #   out = sum_h (agg_h @ Wv[:,h]) @ Wo[h,:] + sum_h mass_h * (bv[h] @ Wo[h,:]) + bo
    # TODO(synk): W_fused / b_fused are weight prep; ideally precomputed once
    #             at load time rather than per forward.
    dh = D // n_heads
    w_val_h = p["w_val"].reshape(D, n_heads, dh)
    w_out_h = p["w_out"].reshape(n_heads, dh, D)
    w_fused = jnp.einsum('dhe,hef->hdf', w_val_h, w_out_h).reshape(n_heads * D, D)
    b_fused = jnp.einsum('he,hef->hf', p["b_val"].reshape(n_heads, dh), w_out_h)

    inp = jnp.concatenate([agg.reshape(N, n_heads * D), mass], axis=-1)
    w_all = jnp.concatenate([w_fused, b_fused], axis=0)
    out = pallas_linear(inp, w_all, p["b_out"])
    return residual + out


# --------------------------------------------------------------------------
# FFN block (pre-norm), row-tiled
# --------------------------------------------------------------------------
def _ffn_kernel(x_ref, g_ref, beta_ref, w1_ref, b1_ref, w2_ref, b2_ref, o_ref):
    x = x_ref[...]
    mu = jnp.mean(x, axis=-1, keepdims=True)
    var = jnp.mean((x - mu) ** 2, axis=-1, keepdims=True)
    xn = (x - mu) * jax.lax.rsqrt(var + LN_EPS) * g_ref[...] + beta_ref[...]
    h = jnp.dot(xn.astype(jnp.bfloat16), w1_ref[...],
                preferred_element_type=jnp.float32) + b1_ref[...]
    # TODO(synk): exact erf-GELU replaced by tanh-approx GELU (erf lowering not
    #             guaranteed in Mosaic); numerically close, not bit-identical.
    h = jax.nn.gelu(h, approximate=True)
    y = jnp.dot(h.astype(jnp.bfloat16), w2_ref[...],
                preferred_element_type=jnp.float32) + b2_ref[...]
    o_ref[...] = x + y


def pallas_ffn(x, p, *, tm=256):
    M, D = x.shape
    F = p["w1"].shape[1]
    tm = min(tm, _round_up(M, 8))
    Mp = _round_up(M, tm)
    xp = _pad_rows(x, Mp)
    out = pl.pallas_call(
        _ffn_kernel,
        out_shape=jax.ShapeDtypeStruct((Mp, D), jnp.float32),
        grid=(Mp // tm,),
        in_specs=[
            pl.BlockSpec((tm, D), lambda i: (i, 0)),
            pl.BlockSpec((1, D), lambda i: (0, 0)),
            pl.BlockSpec((1, D), lambda i: (0, 0)),
            pl.BlockSpec((D, F), lambda i: (0, 0)),
            pl.BlockSpec((1, F), lambda i: (0, 0)),
            pl.BlockSpec((F, D), lambda i: (0, 0)),
            pl.BlockSpec((1, D), lambda i: (0, 0)),
        ],
        out_specs=pl.BlockSpec((tm, D), lambda i: (i, 0)),
        compiler_params=pltpu.CompilerParams(
            dimension_semantics=("parallel",),
            vmem_limit_bytes=32 * 1024 * 1024,
        ),
    )(xp, p["ln_g"].reshape(1, D), p["ln_b"].reshape(1, D),
      p["w1"].astype(jnp.bfloat16), p["b1"].reshape(1, F),
      p["w2"].astype(jnp.bfloat16), p["b2"].reshape(1, D))
    return out[:M]


# --------------------------------------------------------------------------
# Full decoder layer forward
# --------------------------------------------------------------------------
def transformer_decoder_layer_forward(queries, query_pos_encoding,
                                      query_ij_indices,
                                      query_normalized_xy_positions,
                                      batch_offsets, stacked_feature_maps,
                                      spatial_shapes, params, attn_mask=None):
    del query_ij_indices  # unused by the ms_deform_attn path (matches PyTorch)
    batch_offsets_np = np.asarray(batch_offsets)
    N = queries.shape[0]
    bounds = np.concatenate([batch_offsets_np, [N]])
    batch_ids = jnp.asarray(
        np.repeat(np.arange(len(batch_offsets_np)), np.diff(bounds)), jnp.int32)

    x = self_attention_block(queries, query_pos_encoding, batch_offsets_np,
                             params["self_attn"], params["n_heads"], attn_mask)
    x = ms_deform_cross_attention_block(x, query_pos_encoding,
                                        query_normalized_xy_positions,
                                        batch_ids, stacked_feature_maps,
                                        spatial_shapes, params["cross_attn"],
                                        params["n_heads"], params["n_levels"],
                                        params["n_points"])
    x = pallas_ffn(x, params["ffn"])
    return x


# --------------------------------------------------------------------------
# Deterministic parameter init (synthetic weights)
# --------------------------------------------------------------------------
def init_params(key, d_model, n_heads, dim_feedforward, n_levels, n_points):
    ks = jax.random.split(key, 10)
    w = lambda k, s: jax.random.normal(k, s, jnp.float32) * 0.02
    hlp = n_heads * n_levels * n_points
    params = dict(n_heads=n_heads, n_levels=n_levels, n_points=n_points)
    params["self_attn"] = dict(
        ln_g=jnp.ones((d_model,), jnp.float32),
        ln_b=jnp.zeros((d_model,), jnp.float32),
        wq=w(ks[0], (d_model, d_model)), wk=w(ks[1], (d_model, d_model)),
        wv=w(ks[2], (d_model, d_model)), wo=w(ks[3], (d_model, d_model)))
    params["cross_attn"] = dict(
        ln_g=jnp.ones((d_model,), jnp.float32),
        ln_b=jnp.zeros((d_model,), jnp.float32),
        w_off=w(ks[4], (d_model, hlp * 2)), b_off=jnp.zeros((hlp * 2,), jnp.float32),
        w_aw=w(ks[5], (d_model, hlp)), b_aw=jnp.zeros((hlp,), jnp.float32),
        w_val=w(ks[6], (d_model, d_model)), b_val=jnp.zeros((d_model,), jnp.float32),
        w_out=w(ks[7], (d_model, d_model)), b_out=jnp.zeros((d_model,), jnp.float32))
    params["ffn"] = dict(
        ln_g=jnp.ones((d_model,), jnp.float32),
        ln_b=jnp.zeros((d_model,), jnp.float32),
        w1=w(ks[8], (d_model, dim_feedforward)),
        b1=jnp.zeros((dim_feedforward,), jnp.float32),
        w2=w(ks[9], (dim_feedforward, d_model)),
        b2=jnp.zeros((d_model,), jnp.float32))
    return params


if __name__ == "__main__":
    d_model, n_heads, dim_ff = 32, 4, 64
    n_levels, n_points = 4, 4
    B = 2
    counts = [5, 3]
    N = sum(counts)
    Hm = Wm = 16

    key = jax.random.PRNGKey(0)
    k_q, k_pos, k_xy, k_feat, k_p = jax.random.split(key, 5)
    queries = jax.random.normal(k_q, (N, d_model), jnp.float32)
    query_pos = jax.random.normal(k_pos, (N, d_model), jnp.float32)
    query_xy = jax.random.uniform(k_xy, (N, 2), jnp.float32, 0.05, 0.95)
    query_ij = jnp.zeros((N, 2), jnp.int32)
    batch_offsets = jnp.asarray(np.cumsum([0] + counts[:-1]), jnp.int32)  # [0, 5]
    feat_maps = jax.random.normal(k_feat, (B, n_levels, Hm, Wm, d_model),
                                  jnp.float32)
    spatial_shapes = jnp.asarray([[16, 16], [8, 8], [4, 4], [2, 2]], jnp.int32)

    params = init_params(k_p, d_model, n_heads, dim_ff, n_levels, n_points)

    out = transformer_decoder_layer_forward(
        queries, query_pos, query_ij, query_xy, batch_offsets,
        feat_maps, spatial_shapes, params, attn_mask=None)
    out = jax.block_until_ready(out)
    assert out.shape == (N, d_model)
    assert bool(jnp.all(jnp.isfinite(out)))
    print("KERNEL_OK")
</pallas_src>

<mosaic_0001>
module attributes {stable_mosaic.version = 11 : i64} {
  func.func @_self_attn_kernel(%arg0: i32, %arg1: memref<2xi32, #tpu.memory_space<smem>>, %arg2: memref<1x8x32xf32, #tpu.memory_space<vmem>>, %arg3: memref<1x8x32xf32, #tpu.memory_space<vmem>>, %arg4: memref<32x64xbf16, #tpu.memory_space<vmem>>, %arg5: memref<32x32xbf16, #tpu.memory_space<vmem>>, %arg6: memref<32x32xbf16, #tpu.memory_space<vmem>>, %arg7: memref<1x32xf32, #tpu.memory_space<vmem>>, %arg8: memref<1x32xf32, #tpu.memory_space<vmem>>, %arg9: memref<1x8x32xf32, #tpu.memory_space<vmem>>) attributes {dimension_semantics = [#tpu.dimension_semantics<parallel>], iteration_bounds = array<i64: 2>, scalar_prefetch = 1 : i64, scratch_operands = 0 : i64, tpu.core_type = #tpu.core_type<tc>, window_params = [{transform_indices = @transform_0, window_bounds = array<i64: 1, 8, 32>}, {transform_indices = @transform_1, window_bounds = array<i64: 1, 8, 32>}, {pipeline_mode = #tpu.pipeline_mode<synchronous>, transform_indices = @transform_2, window_bounds = array<i64: 32, 64>}, {pipeline_mode = #tpu.pipeline_mode<synchronous>, transform_indices = @transform_3, window_bounds = array<i64: 32, 32>}, {pipeline_mode = #tpu.pipeline_mode<synchronous>, transform_indices = @transform_4, window_bounds = array<i64: 32, 32>}, {pipeline_mode = #tpu.pipeline_mode<synchronous>, transform_indices = @transform_5, window_bounds = array<i64: 1, 32>}, {pipeline_mode = #tpu.pipeline_mode<synchronous>, transform_indices = @transform_6, window_bounds = array<i64: 1, 32>}, {transform_indices = @transform_7, window_bounds = array<i64: 1, 8, 32>}]} {
    %c0 = arith.constant 0 : index
    %c0_0 = arith.constant 0 : index
    %c0_1 = arith.constant 0 : index
    %0 = vector.load %arg2[%c0, %c0_0, %c0_1] : memref<1x8x32xf32, #tpu.memory_space<vmem>>, vector<1x8x32xf32>
    %1 = vector.shape_cast %0 : vector<1x8x32xf32> to vector<8x32xf32>
    %c0_2 = arith.constant 0 : index
    %c0_3 = arith.constant 0 : index
    %c0_4 = arith.constant 0 : index
    %2 = vector.load %arg3[%c0_2, %c0_3, %c0_4] : memref<1x8x32xf32, #tpu.memory_space<vmem>>, vector<1x8x32xf32>
    %3 = vector.shape_cast %2 : vector<1x8x32xf32> to vector<8x32xf32>
    %cst = arith.constant dense<0.000000e+00> : vector<8xf32>
    %4 = vector.multi_reduction <add>, %1, %cst [1] : vector<8x32xf32> to vector<8xf32>
    %5 = vector.shape_cast %4 : vector<8xf32> to vector<8x1xf32>
    %cst_5 = arith.constant 3.200000e+01 : f32
    %6 = vector.broadcast %cst_5 : f32 to vector<8x1xf32>
    %7 = arith.divf %5, %6 : vector<8x1xf32>
    %8 = vector.broadcast %7 : vector<8x1xf32> to vector<8x32xf32>
    %9 = arith.subf %1, %8 : vector<8x32xf32>
    %10 = arith.mulf %9, %9 : vector<8x32xf32>
    %cst_6 = arith.constant dense<0.000000e+00> : vector<8xf32>
    %11 = vector.multi_reduction <add>, %10, %cst_6 [1] : vector<8x32xf32> to vector<8xf32>
    %12 = vector.shape_cast %11 : vector<8xf32> to vector<8x1xf32>
    %cst_7 = arith.constant 3.200000e+01 : f32
    %13 = vector.broadcast %cst_7 : f32 to vector<8x1xf32>
    %14 = arith.divf %12, %13 : vector<8x1xf32>
    %15 = vector.broadcast %7 : vector<8x1xf32> to vector<8x32xf32>
    %16 = arith.subf %1, %15 : vector<8x32xf32>
    %cst_8 = arith.constant 9.99999974E-6 : f32
    %17 = vector.broadcast %cst_8 : f32 to vector<8x1xf32>
    %18 = arith.addf %14, %17 : vector<8x1xf32>
    %19 = math.rsqrt %18 : vector<8x1xf32>
    %20 = vector.broadcast %19 : vector<8x1xf32> to vector<8x32xf32>
    %21 = arith.mulf %16, %20 : vector<8x32xf32>
    %c0_9 = arith.constant 0 : index
    %c0_10 = arith.constant 0 : index
    %22 = vector.load %arg7[%c0_9, %c0_10] : memref<1x32xf32, #tpu.memory_space<vmem>>, vector<1x32xf32>
    %23 = vector.broadcast %22 : vector<1x32xf32> to vector<8x32xf32>
    %24 = arith.mulf %21, %23 : vector<8x32xf32>
    %c0_11 = arith.constant 0 : index
    %c0_12 = arith.constant 0 : index
    %25 = vector.load %arg8[%c0_11, %c0_12] : memref<1x32xf32, #tpu.memory_space<vmem>>, vector<1x32xf32>
    %26 = vector.broadcast %25 : vector<1x32xf32> to vector<8x32xf32>
    %27 = arith.addf %24, %26 : vector<8x32xf32>
    %28 = arith.addf %27, %3 : vector<8x32xf32>
    %29 = arith.truncf %28 : vector<8x32xf32> to vector<8x32xbf16>
    %c0_13 = arith.constant 0 : index
    %c0_14 = arith.constant 0 : index
    %30 = vector.load %arg4[%c0_13, %c0_14] : memref<32x64xbf16, #tpu.memory_space<vmem>>, vector<32x64xbf16>
    %cst_15 = arith.constant dense<0.000000e+00> : vector<8x64xf32>
    %31 = tpu.matmul %29, %30, %cst_15 {dimension_numbers = #tpu.dot_dimension_numbers<[1], [0], [0], [1], [0, 0, 1, 1], [], []>} : vector<8x32xbf16>, vector<32x64xbf16>, vector<8x64xf32> -> vector<8x64xf32>
    %32 = vector.extract_strided_slice %31 {offsets = [0, 0], sizes = [8, 32], strides = [1, 1]} : vector<8x64xf32> to vector<8x32xf32>
    %33 = vector.extract_strided_slice %31 {offsets = [0, 32], sizes = [8, 32], strides = [1, 1]} : vector<8x64xf32> to vector<8x32xf32>
    %34 = arith.truncf %27 : vector<8x32xf32> to vector<8x32xbf16>
    %c0_16 = arith.constant 0 : index
    %c0_17 = arith.constant 0 : index
    %35 = vector.load %arg5[%c0_16, %c0_17] : memref<32x32xbf16, #tpu.memory_space<vmem>>, vector<32x32xbf16>
    %cst_18 = arith.constant dense<0.000000e+00> : vector<8x32xf32>
    %36 = tpu.matmul %34, %35, %cst_18 {dimension_numbers = #tpu.dot_dimension_numbers<[1], [0], [0], [1], [0, 0, 1, 1], [], []>} : vector<8x32xbf16>, vector<32x32xbf16>, vector<8x32xf32> -> vector<8x32xf32>
    %37 = tpu.iota {dimensions = array<i32: 1>} : vector<8x8xi32>
    %38 = arith.index_cast %arg0 : i32 to index
    %39 = memref.load %arg1[%38] : memref<2xi32, #tpu.memory_space<smem>>
    %40 = vector.broadcast %39 : i32 to vector<8x8xi32>
    %41 = arith.cmpi slt, %37, %40 : vector<8x8xi32>
    %cst_19 = arith.constant 0.000000e+00 : f32
    %cst_20 = arith.constant -1.000000e+09 : f32
    %42 = vector.broadcast %cst_19 : f32 to vector<8x8xf32>
    %43 = vector.broadcast %cst_20 : f32 to vector<8x8xf32>
    %44 = arith.select %41, %42, %43 : vector<8x8xi1>, vector<8x8xf32>
    %45 = vector.extract_strided_slice %32 {offsets = [0, 0], sizes = [8, 8], strides = [1, 1]} : vector<8x32xf32> to vector<8x8xf32>
    %46 = arith.truncf %45 : vector<8x8xf32> to vector<8x8xbf16>
    %47 = vector.extract_strided_slice %33 {offsets = [0, 0], sizes = [8, 8], strides = [1, 1]} : vector<8x32xf32> to vector<8x8xf32>
    %48 = arith.truncf %47 : vector<8x8xf32> to vector<8x8xbf16>
    %49 = vector.extract_strided_slice %36 {offsets = [0, 0], sizes = [8, 8], strides = [1, 1]} : vector<8x32xf32> to vector<8x8xf32>
    %50 = arith.truncf %49 : vector<8x8xf32> to vector<8x8xbf16>
    %cst_21 = arith.constant dense<0.000000e+00> : vector<8x8xf32>
    %51 = tpu.matmul %46, %48, %cst_21 {dimension_numbers = #tpu.dot_dimension_numbers<[1], [1], [0], [0], [0, 0, 1, 0], [], []>} : vector<8x8xbf16>, vector<8x8xbf16>, vector<8x8xf32> -> vector<8x8xf32>
    %cst_22 = arith.constant 0.353553385 : f32
    %52 = vector.broadcast %cst_22 : f32 to vector<8x8xf32>
    %53 = arith.mulf %51, %52 : vector<8x8xf32>
    %54 = arith.addf %53, %44 : vector<8x8xf32>
    %cst_23 = arith.constant dense<0xFF800000> : vector<8xf32>
    %55 = vector.multi_reduction <maximumf>, %54, %cst_23 [1] : vector<8x8xf32> to vector<8xf32>
    %56 = vector.shape_cast %55 : vector<8xf32> to vector<8x1xf32>
    %57 = vector.broadcast %56 : vector<8x1xf32> to vector<8x8xf32>
    %58 = arith.subf %54, %57 : vector<8x8xf32>
    %59 = math.exp %58 : vector<8x8xf32>
    %cst_24 = arith.constant dense<0.000000e+00> : vector<8xf32>
    %60 = vector.multi_reduction <add>, %59, %cst_24 [1] : vector<8x8xf32> to vector<8xf32>
    %61 = vector.shape_cast %60 : vector<8xf32> to vector<8x1xf32>
    %62 = tpu.reciprocal %61 {approx = true} : vector<8x1xf32> -> vector<8x1xf32>
    %63 = vector.broadcast %62 : vector<8x1xf32> to vector<8x8xf32>
    %64 = arith.mulf %59, %63 : vector<8x8xf32>
    %65 = arith.truncf %64 : vector<8x8xf32> to vector<8x8xbf16>
    %cst_25 = arith.constant dense<0.000000e+00> : vector<8x8xf32>
    %66 = tpu.matmul %65, %50, %cst_25 {dimension_numbers = #tpu.dot_dimension_numbers<[1], [0], [0], [1], [0, 0, 1, 1], [], []>} : vector<8x8xbf16>, vector<8x8xbf16>, vector<8x8xf32> -> vector<8x8xf32>
    %67 = vector.extract_strided_slice %32 {offsets = [0, 8], sizes = [8, 8], strides = [1, 1]} : vector<8x32xf32> to vector<8x8xf32>
    %68 = arith.truncf %67 : vector<8x8xf32> to vector<8x8xbf16>
    %69 = vector.extract_strided_slice %33 {offsets = [0, 8], sizes = [8, 8], strides = [1, 1]} : vector<8x32xf32> to vector<8x8xf32>
    %70 = arith.truncf %69 : vector<8x8xf32> to vector<8x8xbf16>
    %71 = vector.extract_strided_slice %36 {offsets = [0, 8], sizes = [8, 8], strides = [1, 1]} : vector<8x32xf32> to vector<8x8xf32>
    %72 = arith.truncf %71 : vector<8x8xf32> to vector<8x8xbf16>
    %cst_26 = arith.constant dense<0.000000e+00> : vector<8x8xf32>
    %73 = tpu.matmul %68, %70, %cst_26 {dimension_numbers = #tpu.dot_dimension_numbers<[1], [1], [0], [0], [0, 0, 1, 0], [], []>} : vector<8x8xbf16>, vector<8x8xbf16>, vector<8x8xf32> -> vector<8x8xf32>
    %cst_27 = arith.constant 0.353553385 : f32
    %74 = vector.broadcast %cst_27 : f32 to vector<8x8xf32>
    %75 = arith.mulf %73, %74 : vector<8x8xf32>
    %76 = arith.addf %75, %44 : vector<8x8xf32>
    %cst_28 = arith.constant dense<0xFF800000> : vector<8xf32>
    %77 = vector.multi_reduction <maximumf>, %76, %cst_28 [1] : vector<8x8xf32> to vector<8xf32>
    %78 = vector.shape_cast %77 : vector<8xf32> to vector<8x1xf32>
    %79 = vector.broadcast %78 : vector<8x1xf32> to vector<8x8xf32>
    %80 = arith.subf %76, %79 : vector<8x8xf32>
    %81 = math.exp %80 : vector<8x8xf32>
    %cst_29 = arith.constant dense<0.000000e+00> : vector<8xf32>
    %82 = vector.multi_reduction <add>, %81, %cst_29 [1] : vector<8x8xf32> to vector<8xf32>
    %83 = vector.shape_cast %82 : vector<8xf32> to vector<8x1xf32>
    %84 = tpu.reciprocal %83 {approx = true} : vector<8x1xf32> -> vector<8x1xf32>
    %85 = vector.broadcast %84 : vector<8x1xf32> to vector<8x8xf32>
    %86 = arith.mulf %81, %85 : vector<8x8xf32>
    %87 = arith.truncf %86 : vector<8x8xf32> to vector<8x8xbf16>
    %cst_30 = arith.constant dense<0.000000e+00> : vector<8x8xf32>
    %88 = tpu.matmul %87, %72, %cst_30 {dimension_numbers = #tpu.dot_dimension_numbers<[1], [0], [0], [1], [0, 0, 1, 1], [], []>} : vector<8x8xbf16>, vector<8x8xbf16>, vector<8x8xf32> -> vector<8x8xf32>
    %89 = vector.extract_strided_slice %32 {offsets = [0, 16], sizes = [8, 8], strides = [1, 1]} : vector<8x32xf32> to vector<8x8xf32>
    %90 = arith.truncf %89 : vector<8x8xf32> to vector<8x8xbf16>
    %91 = vector.extract_strided_slice %33 {offsets = [0, 16], sizes = [8, 8], strides = [1, 1]} : vector<8x32xf32> to vector<8x8xf32>
    %92 = arith.truncf %91 : vector<8x8xf32> to vector<8x8xbf16>
    %93 = vector.extract_strided_slice %36 {offsets = [0, 16], sizes = [8, 8], strides = [1, 1]} : vector<8x32xf32> to vector<8x8xf32>
    %94 = arith.truncf %93 : vector<8x8xf32> to vector<8x8xbf16>
    %cst_31 = arith.constant dense<0.000000e+00> : vector<8x8xf32>
    %95 = tpu.matmul %90, %92, %cst_31 {dimension_numbers = #tpu.dot_dimension_numbers<[1], [1], [0], [0], [0, 0, 1, 0], [], []>} : vector<8x8xbf16>, vector<8x8xbf16>, vector<8x8xf32> -> vector<8x8xf32>
    %cst_32 = arith.constant 0.353553385 : f32
    %96 = vector.broadcast %cst_32 : f32 to vector<8x8xf32>
    %97 = arith.mulf %95, %96 : vector<8x8xf32>
    %98 = arith.addf %97, %44 : vector<8x8xf32>
    %cst_33 = arith.constant dense<0xFF800000> : vector<8xf32>
    %99 = vector.multi_reduction <maximumf>, %98, %cst_33 [1] : vector<8x8xf32> to vector<8xf32>
    %100 = vector.shape_cast %99 : vector<8xf32> to vector<8x1xf32>
    %101 = vector.broadcast %100 : vector<8x1xf32> to vector<8x8xf32>
    %102 = arith.subf %98, %101 : vector<8x8xf32>
    %103 = math.exp %102 : vector<8x8xf32>
    %cst_34 = arith.constant dense<0.000000e+00> : vector<8xf32>
    %104 = vector.multi_reduction <add>, %103, %cst_34 [1] : vector<8x8xf32> to vector<8xf32>
    %105 = vector.shape_cast %104 : vector<8xf32> to vector<8x1xf32>
    %106 = tpu.reciprocal %105 {approx = true} : vector<8x1xf32> -> vector<8x1xf32>
    %107 = vector.broadcast %106 : vector<8x1xf32> to vector<8x8xf32>
    %108 = arith.mulf %103, %107 : vector<8x8xf32>
    %109 = arith.truncf %108 : vector<8x8xf32> to vector<8x8xbf16>
    %cst_35 = arith.constant dense<0.000000e+00> : vector<8x8xf32>
    %110 = tpu.matmul %109, %94, %cst_35 {dimension_numbers = #tpu.dot_dimension_numbers<[1], [0], [0], [1], [0, 0, 1, 1], [], []>} : vector<8x8xbf16>, vector<8x8xbf16>, vector<8x8xf32> -> vector<8x8xf32>
    %111 = vector.extract_strided_slice %32 {offsets = [0, 24], sizes = [8, 8], strides = [1, 1]} : vector<8x32xf32> to vector<8x8xf32>
    %112 = arith.truncf %111 : vector<8x8xf32> to vector<8x8xbf16>
    %113 = vector.extract_strided_slice %33 {offsets = [0, 24], sizes = [8, 8], strides = [1, 1]} : vector<8x32xf32> to vector<8x8xf32>
    %114 = arith.truncf %113 : vector<8x8xf32> to vector<8x8xbf16>
    %115 = vector.extract_strided_slice %36 {offsets = [0, 24], sizes = [8, 8], strides = [1, 1]} : vector<8x32xf32> to vector<8x8xf32>
    %116 = arith.truncf %115 : vector<8x8xf32> to vector<8x8xbf16>
    %cst_36 = arith.constant dense<0.000000e+00> : vector<8x8xf32>
    %117 = tpu.matmul %112, %114, %cst_36 {dimension_numbers = #tpu.dot_dimension_numbers<[1], [1], [0], [0], [0, 0, 1, 0], [], []>} : vector<8x8xbf16>, vector<8x8xbf16>, vector<8x8xf32> -> vector<8x8xf32>
    %cst_37 = arith.constant 0.353553385 : f32
    %118 = vector.broadcast %cst_37 : f32 to vector<8x8xf32>
    %119 = arith.mulf %117, %118 : vector<8x8xf32>
    %120 = arith.addf %119, %44 : vector<8x8xf32>
    %cst_38 = arith.constant dense<0xFF800000> : vector<8xf32>
    %121 = vector.multi_reduction <maximumf>, %120, %cst_38 [1] : vector<8x8xf32> to vector<8xf32>
    %122 = vector.shape_cast %121 : vector<8xf32> to vector<8x1xf32>
    %123 = vector.broadcast %122 : vector<8x1xf32> to vector<8x8xf32>
    %124 = arith.subf %120, %123 : vector<8x8xf32>
    %125 = math.exp %124 : vector<8x8xf32>
    %cst_39 = arith.constant dense<0.000000e+00> : vector<8xf32>
    %126 = vector.multi_reduction <add>, %125, %cst_39 [1] : vector<8x8xf32> to vector<8xf32>
    %127 = vector.shape_cast %126 : vector<8xf32> to vector<8x1xf32>
    %128 = tpu.reciprocal %127 {approx = true} : vector<8x1xf32> -> vector<8x1xf32>
    %129 = vector.broadcast %128 : vector<8x1xf32> to vector<8x8xf32>
    %130 = arith.mulf %125, %129 : vector<8x8xf32>
    %131 = arith.truncf %130 : vector<8x8xf32> to vector<8x8xbf16>
    %cst_40 = arith.constant dense<0.000000e+00> : vector<8x8xf32>
    %132 = tpu.matmul %131, %116, %cst_40 {dimension_numbers = #tpu.dot_dimension_numbers<[1], [0], [0], [1], [0, 0, 1, 1], [], []>} : vector<8x8xbf16>, vector<8x8xbf16>, vector<8x8xf32> -> vector<8x8xf32>
    %133 = tpu.concatenate %66, %88, %110, %132 in 1 : vector<8x8xf32>, vector<8x8xf32>, vector<8x8xf32>, vector<8x8xf32> -> vector<8x32xf32>
    %134 = arith.truncf %133 : vector<8x32xf32> to vector<8x32xbf16>
    %c0_41 = arith.constant 0 : index
    %c0_42 = arith.constant 0 : index
    %135 = vector.load %arg6[%c0_41, %c0_42] : memref<32x32xbf16, #tpu.memory_space<vmem>>, vector<32x32xbf16>
    %cst_43 = arith.constant dense<0.000000e+00> : vector<8x32xf32>
    %136 = tpu.matmul %134, %135, %cst_43 {dimension_numbers = #tpu.dot_dimension_numbers<[1], [0], [0], [1], [0, 0, 1, 1], [], []>} : vector<8x32xbf16>, vector<32x32xbf16>, vector<8x32xf32> -> vector<8x32xf32>
    %137 = arith.addf %1, %136 : vector<8x32xf32>
    %c0_44 = arith.constant 0 : index
    %c0_45 = arith.constant 0 : index
    %c0_46 = arith.constant 0 : index
    %138 = vector.load %arg9[%c0_44, %c0_45, %c0_46] : memref<1x8x32xf32, #tpu.memory_space<vmem>>, vector<1x8x32xf32>
    %139 = vector.shape_cast %138 : vector<1x8x32xf32> to vector<8x32xf32>
    %140 = vector.shape_cast %137 : vector<8x32xf32> to vector<1x8x32xf32>
    tpu.vector_store %arg9[%c0_44, %c0_45, %c0_46], %140 {strides = array<i32>} : memref<1x8x32xf32, #tpu.memory_space<vmem>>, vector<1x8x32xf32>,
    return
  }
  func.func @transform_0(%arg0: i32, %arg1: memref<2xi32, #tpu.memory_space<smem>>) -> (i32, i32, i32) {
    %c0_i32 = arith.constant 0 : i32
    %c0_i32_0 = arith.constant 0 : i32
    %c0_i32_1 = arith.constant 0 : i32
    return %arg0, %c0_i32, %c0_i32_0 : i32, i32, i32
  }
  func.func @transform_1(%arg0: i32, %arg1: memref<2xi32, #tpu.memory_space<smem>>) -> (i32, i32, i32) {
    %c0_i32 = arith.constant 0 : i32
    %c0_i32_0 = arith.constant 0 : i32
    %c0_i32_1 = arith.constant 0 : i32
    return %arg0, %c0_i32, %c0_i32_0 : i32, i32, i32
  }
  func.func @transform_2(%arg0: i32, %arg1: memref<2xi32, #tpu.memory_space<smem>>) -> (i32, i32) {
    %c0_i32 = arith.constant 0 : i32
    %c0_i32_0 = arith.constant 0 : i32
    %c0_i32_1 = arith.constant 0 : i32
    return %c0_i32, %c0_i32_0 : i32, i32
  }
  func.func @transform_3(%arg0: i32, %arg1: memref<2xi32, #tpu.memory_space<smem>>) -> (i32, i32) {
    %c0_i32 = arith.constant 0 : i32
    %c0_i32_0 = arith.constant 0 : i32
    %c0_i32_1 = arith.constant 0 : i32
    return %c0_i32, %c0_i32_0 : i32, i32
  }
  func.func @transform_4(%arg0: i32, %arg1: memref<2xi32, #tpu.memory_space<smem>>) -> (i32, i32) {
    %c0_i32 = arith.constant 0 : i32
    %c0_i32_0 = arith.constant 0 : i32
    %c0_i32_1 = arith.constant 0 : i32
    return %c0_i32, %c0_i32_0 : i32, i32
  }
  func.func @transform_5(%arg0: i32, %arg1: memref<2xi32, #tpu.memory_space<smem>>) -> (i32, i32) {
    %c0_i32 = arith.constant 0 : i32
    %c0_i32_0 = arith.constant 0 : i32
    %c0_i32_1 = arith.constant 0 : i32
    return %c0_i32, %c0_i32_0 : i32, i32
  }
  func.func @transform_6(%arg0: i32, %arg1: memref<2xi32, #tpu.memory_space<smem>>) -> (i32, i32) {
    %c0_i32 = arith.constant 0 : i32
    %c0_i32_0 = arith.constant 0 : i32
    %c0_i32_1 = arith.constant 0 : i32
    return %c0_i32, %c0_i32_0 : i32, i32
  }
  func.func @transform_7(%arg0: i32, %arg1: memref<2xi32, #tpu.memory_space<smem>>) -> (i32, i32, i32) {
    %c0_i32 = arith.constant 0 : i32
    %c0_i32_0 = arith.constant 0 : i32
    %c0_i32_1 = arith.constant 0 : i32
    return %arg0, %c0_i32, %c0_i32_0 : i32, i32, i32
  }
}

</mosaic_0001>

<llo_original>
// kernel: tpu_custom_call.1
$region0: #{tpu_custom_call.1}
  #allocation0 [shape = 'u32[]', space=smem, size = 0x4, offset = 0x4, fixed_abs, tag = 'smem constant byte address 0x4 - core index']
  #allocation1 [shape = 'u32[144,128]{1,0:T(1,128)}', space=vmem, size = 0x12000, scoped, tag = 'internal scratch']
  #allocation2 [shape = 's32[1]{0}', space=sflag, size = 0x4, scoped, tag = 'scoped memory for tpu_custom_call.1']
  #allocation3 [shape = 'u8[512]{0}', space=smem, size = 0x200, scoped, tag = 'prefetched SMEM operand 0']
  %s0 = inlined_call_operand.hbm [shape: s32[2], index: 0, kind: input, shape index: {}]
  %s1 = inlined_call_operand.hbm [shape: f32[2,8,32], index: 1, kind: input, shape index: {}]
  %s2 = inlined_call_operand.hbm [shape: f32[2,8,32], index: 2, kind: input, shape index: {}]
  %s3 = inlined_call_operand.hbm [shape: bf16[32,64], index: 3, kind: input, shape index: {}]
  %s4 = inlined_call_operand.hbm [shape: bf16[32,32], index: 4, kind: input, shape index: {}]
  %s5 = inlined_call_operand.hbm [shape: bf16[32,32], index: 5, kind: input, shape index: {}]
  %s6 = inlined_call_operand.vmem [shape: f32[1,32], index: 6, kind: input, shape index: {}]
  %s7 = inlined_call_operand.vmem [shape: f32[1,32], index: 7, kind: input, shape index: {}]
  %s8 = inlined_call_operand.hbm [shape: f32[2,8,32], index: 8, kind: output, shape index: {}]
  %s9 = sld [smem:[#allocation0]]
  $region81: #{tpu_custom_call.1} parent=0
    _
  %s11 = ssub.s32 1, %s9
  %s12 = scalar_select 0, %s11, %s9
  %14 = dma.hbm_to_smem %s0, 16, [#allocation3], [#allocation2]
  %15 = dma.done [#allocation2], 16
  %16 = sfence
  $region1: #{tpu_custom_call.1} parent=0
    #allocation4 [shape = 'u8[8192]{0}', space=vmem, size = 0x2000, scoped, tag = 'input window, operand 1']
    #allocation5 [shape = 's32[2]{0}', space=sflag, size = 0x8, scoped, tag = 'scoped memory for tpu_custom_call.1']
    #allocation6 [shape = 's32[2]{0}', space=sflag, size = 0x8, scoped, tag = 'scoped memory for tpu_custom_call.1']
    #allocation7 [shape = 'u8[8192]{0}', space=vmem, size = 0x2000, scoped, tag = 'input window, operand 2']
    #allocation8 [shape = 's32[2]{0}', space=sflag, size = 0x8, scoped, tag = 'scoped memory for tpu_custom_call.1']
    #allocation9 [shape = 'u8[8192]{0}', space=vmem, size = 0x2000, scoped, tag = 'input window, operand 3, single buffered']
    #allocation10 [shape = 'u8[8192]{0}', space=vmem, size = 0x2000, scoped, tag = 'input window, operand 4, single buffered']
    #allocation11 [shape = 's32[1]{0}', space=sflag, size = 0x4, scoped, tag = 'scoped memory for tpu_custom_call.1']
    #allocation12 [shape = 'u8[8192]{0}', space=vmem, size = 0x2000, scoped, tag = 'input window, operand 5, single buffered']
    #allocation13 [shape = 'u8[8192]{0}', space=vmem, size = 0x2000, scoped, tag = 'output window, operand 0']
    %17 = vsyncpa [#allocation5], 0
    %s18 = scalar_lea.sflag [#allocation5], 1
    %19 = vsyncpa %s18, 0
    %20 = vsyncpa [#allocation8], 0
    %s21 = scalar_lea.sflag [#allocation8], 1
    %22 = vsyncpa %s21, 0
    %23 = vsyncpa [#allocation11], 0
    %24 = vsyncpa [#allocation6], 0
    %s25 = scalar_lea.sflag [#allocation6], 1
    %26 = vsyncpa %s25, 0
    loop: start=0, step=1, limit=4
    $region2: #{tpu_custom_call.1} parent=1 // loop_pre_header
      _
    $region3: #{tpu_custom_call.1} parent=1 // loop_header
      %s28 = sphi 0, %s32
      %p29 = scmp.ge.s32.totalorder %s28, 4
      %s38 = sphi 0, %s40
      %s41 = sphi 0, %s38
      %s42 = sphi 0, %s41
      %s58 = sphi 0, %s42
      %s64 = sphi 0, %s66
      %s67 = sphi 0, %s64
      %s68 = sphi 0, %s67
      %s84 = sphi 0, %s68
      %s88 = sphi 0, %s88
      %s90 = sphi 0, %s88
      %s91 = sphi 0, %s90
      %s105 = sphi 0, %s91
      %s109 = sphi 0, %s109
      %s111 = sphi 0, %s109
      %s112 = sphi 0, %s111
      %s126 = sphi 0, %s112
      %s130 = sphi 0, %s130
      %s132 = sphi 0, %s130
      %s133 = sphi 0, %s132
      %s147 = sphi 0, %s133
      %s151 = sphi 0, %s151
      %s153 = sphi 0, %s151
      %s154 = sphi 0, %s153
      %s168 = sphi 0, %s154
      %s172 = sphi 0, %s172
      %s174 = sphi 0, %s172
      %s175 = sphi 0, %s174
      %s189 = sphi 0, %s175
      %s195 = sphi 0, %s197
      %s198 = sphi 0, %s195
      %s199 = sphi 0, %s198
      %s215 = sphi 0, %s199
    $region4: #{tpu_custom_call.1} parent=1 // loop_header_branch
      %31 = sbr.rel (%p29) target = $region8
    $region5: #{tpu_custom_call.1} parent=1 // loop_body
      %s33 = ssub.s32 %s28, 1
      %s34 = ssub.s32 %s28, 2
      %s35 = sadd.s32 %s28, 1
      %s36 = ssub.s32 %s28, %s35
      %p37 = scmp.eq.s32.totalorder %s36, 0
      %s39 = sadd.s32 %s38, 1
      %s40 = scalar_select %p37, %s38, %s39
      %p43 = pneg %p37
      %p44 = scmp.eq.s32.totalorder %s28, 1
      %p45 = por %p43, %p44
      %p46 = scmp.ne.s32.totalorder %s38, %s41
      %p47 = scmp.eq.s32.totalorder %s28, 0
      %p48 = por %p46, %p47
      %p49 = scmp.ne.s32.totalorder %s38, %s41
      %p50 = scmp.eq.s32.totalorder %s33, 1
      %p51 = por %p49, %p50
      %p52 = scmp.ne.s32.totalorder %s41, %s42
      %p53 = scmp.eq.s32.totalorder %s33, 0
      %p54 = por %p52, %p53
      %p55 = scmp.ne.s32.totalorder %s41, %s42
      %p56 = scmp.eq.s32.totalorder %s34, 1
      %p57 = por %p55, %p56
      %p59 = scmp.ne.s32.totalorder %s42, %s58
      %p60 = scmp.eq.s32.totalorder %s34, 0
      %p61 = por %p59, %p60
      %s62 = ssub.s32 %s28, %s35
      %p63 = scmp.eq.s32.totalorder %s62, 0
      %s65 = sadd.s32 %s64, 1
      %s66 = scalar_select %p63, %s64, %s65
      %p69 = pneg %p63
      %p70 = scmp.eq.s32.totalorder %s28, 1
      %p71 = por %p69, %p70
      %p72 = scmp.ne.s32.totalorder %s64, %s67
      %p73 = scmp.eq.s32.totalorder %s28, 0
      %p74 = por %p72, %p73
      %p75 = scmp.ne.s32.totalorder %s64, %s67
      %p76 = scmp.eq.s32.totalorder %s33, 1
      %p77 = por %p75, %p76
      %p78 = scmp.ne.s32.totalorder %s67, %s68
      %p79 = scmp.eq.s32.totalorder %s33, 0
      %p80 = por %p78, %p79
      %p81 = scmp.ne.s32.totalorder %s67, %s68
      %p82 = scmp.eq.s32.totalorder %s34, 1
      %p83 = por %p81, %p82
      %p85 = scmp.ne.s32.totalorder %s68, %s84
      %p86 = scmp.eq.s32.totalorder %s34, 0
      %p87 = por %p85, %p86
      %s89 = sadd.s32 %s88, 1
      %p92 = scmp.eq.s32.totalorder %s28, 1
      %p93 = scmp.ne.s32.totalorder %s88, %s90
      %p94 = scmp.eq.s32.totalorder %s28, 0
      %p95 = por %p93, %p94
      %p96 = scmp.ne.s32.totalorder %s88, %s90
      %p97 = scmp.eq.s32.totalorder %s33, 1
      %p98 = por %p96, %p97
      %p99 = scmp.ne.s32.totalorder %s90, %s91
      %p100 = scmp.eq.s32.totalorder %s33, 0
      %p101 = por %p99, %p100
      %p102 = scmp.ne.s32.totalorder %s90, %s91
      %p103 = scmp.eq.s32.totalorder %s34, 1
      %p104 = por %p102, %p103
      %p106 = scmp.ne.s32.totalorder %s91, %s105
      %p107 = scmp.eq.s32.totalorder %s34, 0
      %p108 = por %p106, %p107
      %s110 = sadd.s32 %s109, 1
      %p113 = scmp.eq.s32.totalorder %s28, 1
      %p114 = scmp.ne.s32.totalorder %s109, %s111
      %p115 = scmp.eq.s32.totalorder %s28, 0
      %p116 = por %p114, %p115
      %p117 = scmp.ne.s32.totalorder %s109, %s111
      %p118 = scmp.eq.s32.totalorder %s33, 1
      %p119 = por %p117, %p118
      %p120 = scmp.ne.s32.totalorder %s111, %s112
      %p121 = scmp.eq.s32.totalorder %s33, 0
      %p122 = por %p120, %p121
      %p123 = scmp.ne.s32.totalorder %s111, %s112
      %p124 = scmp.eq.s32.totalorder %s34, 1
      %p125 = por %p123, %p124
      %p127 = scmp.ne.s32.totalorder %s112, %s126
      %p128 = scmp.eq.s32.totalorder %s34, 0
      %p129 = por %p127, %p128
      %s131 = sadd.s32 %s130, 1
      %p134 = scmp.eq.s32.totalorder %s28, 1
      %p135 = scmp.ne.s32.totalorder %s130, %s132
      %p136 = scmp.eq.s32.totalorder %s28, 0
      %p137 = por %p135, %p136
      %p138 = scmp.ne.s32.totalorder %s130, %s132
      %p139 = scmp.eq.s32.totalorder %s33, 1
      %p140 = por %p138, %p139
      %p141 = scmp.ne.s32.totalorder %s132, %s133
      %p142 = scmp.eq.s32.totalorder %s33, 0
      %p143 = por %p141, %p142
      %p144 = scmp.ne.s32.totalorder %s132, %s133
      %p145 = scmp.eq.s32.totalorder %s34, 1
      %p146 = por %p144, %p145
      %p148 = scmp.ne.s32.totalorder %s133, %s147
      %p149 = scmp.eq.s32.totalorder %s34, 0
      %p150 = por %p148, %p149
      %s152 = sadd.s32 %s151, 1
      %p155 = scmp.eq.s32.totalorder %s28, 1
      %p156 = scmp.ne.s32.totalorder %s151, %s153
      %p157 = scmp.eq.s32.totalorder %s28, 0
      %p158 = por %p156, %p157
      %p159 = scmp.ne.s32.totalorder %s151, %s153
      %p160 = scmp.eq.s32.totalorder %s33, 1
      %p161 = por %p159, %p160
      %p162 = scmp.ne.s32.totalorder %s153, %s154
      %p163 = scmp.eq.s32.totalorder %s33, 0
      %p164 = por %p162, %p163
      %p165 = scmp.ne.s32.totalorder %s153, %s154
      %p166 = scmp.eq.s32.totalorder %s34, 1
      %p167 = por %p165, %p166
      %p169 = scmp.ne.s32.totalorder %s154, %s168
      %p170 = scmp.eq.s32.totalorder %s34, 0
      %p171 = por %p169, %p170
      %s173 = sadd.s32 %s172, 1
      %p176 = scmp.eq.s32.totalorder %s28, 1
      %p177 = scmp.ne.s32.totalorder %s172, %s174
      %p178 = scmp.eq.s32.totalorder %s28, 0
      %p179 = por %p177, %p178
      %p180 = scmp.ne.s32.totalorder %s172, %s174
      %p181 = scmp.eq.s32.totalorder %s33, 1
      %p182 = por %p180, %p181
      %p183 = scmp.ne.s32.totalorder %s174, %s175
      %p184 = scmp.eq.s32.totalorder %s33, 0
      %p185 = por %p183, %p184
      %p186 = scmp.ne.s32.totalorder %s174, %s175
      %p187 = scmp.eq.s32.totalorder %s34, 1
      %p188 = por %p186, %p187
      %p190 = scmp.ne.s32.totalorder %s175, %s189
      %p191 = scmp.eq.s32.totalorder %s34, 0
      %p192 = por %p190, %p191
      %s193 = ssub.s32 %s28, %s35
      %p194 = scmp.eq.s32.totalorder %s193, 0
      %s196 = sadd.s32 %s195, 1
      %s197 = scalar_select %p194, %s195, %s196
      %p200 = pneg %p194
      %p201 = scmp.eq.s32.totalorder %s28, 1
      %p202 = por %p200, %p201
      %p203 = scmp.ne.s32.totalorder %s195, %s198
      %p204 = scmp.eq.s32.totalorder %s28, 0
      %p205 = por %p203, %p204
      %p206 = scmp.ne.s32.totalorder %s195, %s198
      %p207 = scmp.eq.s32.totalorder %s33, 1
      %p208 = por %p206, %p207
      %p209 = scmp.ne.s32.totalorder %s198, %s199
      %p210 = scmp.eq.s32.totalorder %s33, 0
      %p211 = por %p209, %p210
      %p212 = scmp.ne.s32.totalorder %s198, %s199
      %p213 = scmp.eq.s32.totalorder %s34, 1
      %p214 = por %p212, %p213
      %p216 = scmp.ne.s32.totalorder %s199, %s215
      %p217 = scmp.eq.s32.totalorder %s34, 0
      %p218 = por %p216, %p217
      %p219 = scmp.le.s32.totalorder 1, %s28
      %p220 = scmp.lt.s32.totalorder %s28, 3
      %p221 = pnand %p219, %p220
      %p222 = pneg %p221
      // Predicated region
      $region9: #{tpu_custom_call.1} parent=5 // pred_check
        _
      $region10: #{tpu_custom_call.1} parent=5 // pred_check_branch
        %224 = sbr.rel (%p221) target = $region12
      $region11: #{tpu_custom_call.1} parent=5 // pred_region
        %s225 = ssub.s32 %s28, 1
        // Predicated region
        $region13: #{tpu_custom_call.1} parent=11 // pred_check
          %p226 = pneg %p101
        $region14: #{tpu_custom_call.1} parent=11 // pred_check_branch
          %228 = sbr.rel (%p226) target = $region16
        $region15: #{tpu_custom_call.1} parent=11 // pred_region
          %s230 = ssub.s32 256, 256
          %231 = vsyncadd [#allocation8], %s230
          %s232 = sshll.u32 [#allocation9], 4
          %s233 = int_to_ptr.vmem [resolvable:$true] %s232
          %238 = dma.hbm_to_vmem [thread:$0]  %s3, 256, %s233, [#allocation8], 64, 64, 4
        $region16: #{tpu_custom_call.1} parent=11 // pred_fallthru
          _
        // Predicated region
        $region17: #{tpu_custom_call.1} parent=11 // pred_check
          %p239 = pneg %p122
        $region18: #{tpu_custom_call.1} parent=11 // pred_check_branch
          %241 = sbr.rel (%p239) target = $region20
        $region19: #{tpu_custom_call.1} parent=11 // pred_region
          %s243 = ssub.s32 256, 256
          %244 = vsyncadd [#allocation11], %s243
          %s245 = sshll.u32 [#allocation10], 4
          %s246 = int_to_ptr.vmem [resolvable:$true] %s245
          %251 = dma.hbm_to_vmem [thread:$0]  %s4, 256, %s246, [#allocation11], 64, 64, 4
        $region20: #{tpu_custom_call.1} parent=11 // pred_fallthru
          _
        // Predicated region
        $region21: #{tpu_custom_call.1} parent=11 // pred_check
          %p252 = pneg %p143
        $region22: #{tpu_custom_call.1} parent=11 // pred_check_branch
          %254 = sbr.rel (%p252) target = $region24
        $region23: #{tpu_custom_call.1} parent=11 // pred_region
          %s256 = ssub.s32 256, 256
          %257 = vsyncadd [#allocation11], %s256
          %s258 = sshll.u32 [#allocation12], 4
          %s259 = int_to_ptr.vmem [resolvable:$true] %s258
          %264 = dma.hbm_to_vmem [thread:$0]  %s5, 256, %s259, [#allocation11], 64, 64, 4
        $region24: #{tpu_custom_call.1} parent=11 // pred_fallthru
          _
        // Predicated region
        $region25: #{tpu_custom_call.1} parent=11 // pred_check
          %p265 = pneg %p164
        $region26: #{tpu_custom_call.1} parent=11 // pred_check_branch
          %267 = sbr.rel (%p265) target = $region28
        $region27: #{tpu_custom_call.1} parent=11 // pred_region
          _
        $region28: #{tpu_custom_call.1} parent=11 // pred_fallthru
          _
        // Predicated region
        $region29: #{tpu_custom_call.1} parent=11 // pred_check
          %p268 = pneg %p185
        $region30: #{tpu_custom_call.1} parent=11 // pred_check_branch
          %270 = sbr.rel (%p268) target = $region32
        $region31: #{tpu_custom_call.1} parent=11 // pred_region
          _
        $region32: #{tpu_custom_call.1} parent=11 // pred_fallthru
          _
      $region12: #{tpu_custom_call.1} parent=5 // pred_fallthru
        _
      %p271 = scmp.lt.s32.totalorder %s28, 2
      // Predicated region
      $region33: #{tpu_custom_call.1} parent=5 // pred_check
        %p272 = pneg %p271
      $region34: #{tpu_custom_call.1} parent=5 // pred_check_branch
        %274 = sbr.rel (%p272) target = $region36
      $region35: #{tpu_custom_call.1} parent=5 // pred_region
        // Predicated region
        $region37: #{tpu_custom_call.1} parent=35 // pred_check
          %p275 = pneg %p48
        $region38: #{tpu_custom_call.1} parent=35 // pred_check_branch
          %277 = sbr.rel (%p275) target = $region40
        $region39: #{tpu_custom_call.1} parent=35 // pred_region
          %s278 = sand.u32 %s38, 1
          %s279 = scalar_lea.sflag [#allocation5], %s278
          %s280 = sand.u32 %s38, 1
          %s281 = smul.addr %s280, 8
          %s282 = scalar_lea.vmem [#allocation4], %s281
          %s284 = ssub.s32 128, 128
          %285 = vsyncadd %s279, %s284
          %s286 = smul.addr %s28, 128
          %s287 = scalar_lea.hbm %s1, %s286
          %s289 = sshll.u32 %s282, 4
          %s290 = int_to_ptr.vmem [resolvable:$true] %s289
          %292 = dma.hbm_to_vmem [thread:$0]  %s287, 128, %s290, %s279
        $region40: #{tpu_custom_call.1} parent=35 // pred_fallthru
          _
        // Predicated region
        $region41: #{tpu_custom_call.1} parent=35 // pred_check
          %p293 = pneg %p74
        $region42: #{tpu_custom_call.1} parent=35 // pred_check_branch
          %295 = sbr.rel (%p293) target = $region44
        $region43: #{tpu_custom_call.1} parent=35 // pred_region
          %s296 = sand.u32 %s28, 1
          %s297 = scalar_lea.sflag [#allocation8], %s296
          %s298 = sand.u32 %s64, 1
          %s299 = smul.addr %s298, 8
          %s300 = scalar_lea.vmem [#allocation7], %s299
          %s302 = ssub.s32 128, 128
          %303 = vsyncadd %s297, %s302
          %s304 = smul.addr %s28, 128
          %s305 = scalar_lea.hbm %s2, %s304
          %s307 = sshll.u32 %s300, 4
          %s308 = int_to_ptr.vmem [resolvable:$true] %s307
          %310 = dma.hbm_to_vmem [thread:$0]  %s305, 128, %s308, %s297
        $region44: #{tpu_custom_call.1} parent=35 // pred_fallthru
          _
      $region36: #{tpu_custom_call.1} parent=5 // pred_fallthru
        _
      %p311 = scmp.le.s32.totalorder 1, %s28
      %p312 = scmp.lt.s32.totalorder %s28, 3
      %p313 = pnand %p311, %p312
      %p314 = pneg %p313
      // Predicated region
      $region45: #{tpu_custom_call.1} parent=5 // pred_check
        _
      $region46: #{tpu_custom_call.1} parent=5 // pred_check_branch
        %316 = sbr.rel (%p313) target = $region48
      $region47: #{tpu_custom_call.1} parent=5 // pred_region
        %s317 = ssub.s32 %s28, 1
        %s318 = sand.u32 %s41, 1
        %s319 = scalar_lea.sflag [#allocation5], %s318
        %s320 = sand.u32 %s41, 1
        %s321 = smul.addr %s320, 8
        %s322 = scalar_lea.vmem [#allocation4], %s321
        // Predicated region
        $region49: #{tpu_custom_call.1} parent=47 // pred_check
          %p323 = pneg %p54
        $region50: #{tpu_custom_call.1} parent=47 // pred_check_branch
          %325 = sbr.rel (%p323) target = $region52
        $region51: #{tpu_custom_call.1} parent=47 // pred_region
          %326 = dma.done %s319, 128
        $region52: #{tpu_custom_call.1} parent=47 // pred_fallthru
          _
        %s327 = sand.u32 %s33, 1
        %s328 = scalar_lea.sflag [#allocation8], %s327
        %s329 = sand.u32 %s67, 1
        %s330 = smul.addr %s329, 8
        %s331 = scalar_lea.vmem [#allocation7], %s330
        // Predicated region
        $region53: #{tpu_custom_call.1} parent=47 // pred_check
          %p332 = pneg %p80
        $region54: #{tpu_custom_call.1} parent=47 // pred_check_branch
          %334 = sbr.rel (%p332) target = $region56
        $region55: #{tpu_custom_call.1} parent=47 // pred_region
          %335 = dma.done %s328, 128
        $region56: #{tpu_custom_call.1} parent=47 // pred_fallthru
          _
        // Predicated region
        $region57: #{tpu_custom_call.1} parent=47 // pred_check
          %p336 = pneg %p101
        $region58: #{tpu_custom_call.1} parent=47 // pred_check_branch
          %338 = sbr.rel (%p336) target = $region60
        $region59: #{tpu_custom_call.1} parent=47 // pred_region
          %339 = dma.done [#allocation8], 256
        $region60: #{tpu_custom_call.1} parent=47 // pred_fallthru
          _
        // Predicated region
        $region61: #{tpu_custom_call.1} parent=47 // pred_check
          %p340 = pneg %p122
        $region62: #{tpu_custom_call.1} parent=47 // pred_check_branch
          %342 = sbr.rel (%p340) target = $region64
        $region63: #{tpu_custom_call.1} parent=47 // pred_region
          %343 = dma.done [#allocation11], 256
        $region64: #{tpu_custom_call.1} parent=47 // pred_fallthru
          _
        // Predicated region
        $region65: #{tpu_custom_call.1} parent=47 // pred_check
          %p344 = pneg %p143
        $region66: #{tpu_custom_call.1} parent=47 // pred_check_branch
          %346 = sbr.rel (%p344) target = $region68
        $region67: #{tpu_custom_call.1} parent=47 // pred_region
          %347 = dma.done [#allocation11], 256
        $region68: #{tpu_custom_call.1} parent=47 // pred_fallthru
          _
        %s348 = sand.u32 %s41, 1
        %s349 = scalar_lea.sflag [#allocation5], %s348
        %s350 = sand.u32 %s41, 1
        %s351 = smul.addr %s350, 8
        %s352 = scalar_lea.vmem [#allocation4], %s351
        %p353 = pneg %p54
        %p354 = pneg %p51
        %s355 = sand.u32 %s33, 1
        %s356 = scalar_lea.sflag [#allocation8], %s355
        %s357 = sand.u32 %s67, 1
        %s358 = smul.addr %s357, 8
        %s359 = scalar_lea.vmem [#allocation7], %s358
        %p360 = pneg %p80
        %p361 = pneg %p77
        %p362 = pneg %p101
        %p363 = pneg %p98
        %p364 = pneg %p122
        %p365 = pneg %p119
        %p366 = pneg %p143
        %p367 = pneg %p140
        %p368 = pneg %p164
        %p369 = pneg %p161
        %p370 = pneg %p185
        %p371 = pneg %p182
        %p372 = pneg %p211
        %p373 = pneg %p208
        %s374 = sand.u32 %s198, 1
        %s375 = scalar_lea.sflag [#allocation6], %s374
        %s376 = sand.u32 %s198, 1
        %s377 = smul.addr %s376, 8
        %s378 = scalar_lea.vmem [#allocation13], %s377
        %v380 = vld [vmem:[%s322] sm:$0xff]
        %v381 = vld [vmem:[%s331] sm:$0xff]
        %vm382 = vcmask 261120
        %v383 = vsel %vm382, %v380, 0.0
        %384 = vadd.xlane.f32.xlu0 %v383
        %v385 = vpop.xlane.xlu0 %384
        %v386 = vrcp.pop 32.0
        %v387 = vmul.f32 %v385, %v386
        %v388 = vsub.f32 %v380, %v387
        %v389 = vmul.f32 %v388, %v388
        %v390 = vsel %vm382, %v389, 0.0
        %391 = vadd.xlane.f32.xlu0 %v390
        %v392 = vpop.xlane.xlu0 %391
        %v393 = vmul.f32 %v392, %v386
        %v394 = vadd.f32 %v393, 1e-05
        %v395 = vrsqrt.pop %v394
        %v396 = vmul.f32 %v388, %v395
        %v397 = vld [vmem:[%s6] sm:$0x1]
        %v399 = vlaneseq
        %v400 = vshrl.u32 %v399, 7
        %v401 = vsub.s32 0, %v400
        %v402 = vrot.slane %v397, %v401
        %v404 = vmul.f32 %v396, %v402
        %v405 = vld [vmem:[%s7] sm:$0x1]
        %v407 = vlaneseq
        %v408 = vshrl.u32 %v407, 7
        %v409 = vsub.s32 0, %v408
        %v410 = vrot.slane %v405, %v409
        %v412 = vadd.f32 %v404, %v410
        %v413 = vadd.f32 %v412, %v381
        %v414 = vpack.c.bf16 %v413, %v413
        %v415 = vld [vmem:[#allocation9] sm:$0xf]
        %v416 = vld [vmem:[#allocation9 + $0x4] sm:$0xf]
        %v417 = vld [vmem:[#allocation9 + $0x8] sm:$0xf]
        %v418 = vld [vmem:[#allocation9 + $0xc] sm:$0xf]
        %v423 = vunpack.c.l.b16 %v415
        %v424 = vunpack.c.l.b16 %v416
        %v425 = vunpack.c.l.b16 %v417
        %v426 = vunpack.c.l.b16 %v418
        %v427 = vpack.c.b16 %v424, %v423
        %v428 = vpack.c.b16 %v426, %v425
        %v432 = vsel %vm382, %v414, 0
        %434 = vmatprep.subr.bf16.mxu0 0
        %435 = vmatpush1.bf16.msra.mxu0 0
        %436 = vmatprep.subr.bf16.mxu0 0
        %437 = vmatpush1.bf16.msra.mxu0 0
        %438 = vmatprep.subr.bf16.mxu0 0
        %439 = vmatpush1.bf16.msra.mxu0 0
        %440 = vmatprep.subr.bf16.mxu0 0
        %441 = vmatpush1.bf16.msra.mxu0 0
        %442 = vmatprep.subr.bf16.mxu0 0
        %443 = vmatpush1.bf16.msra.mxu0 0
        %444 = vmatprep.subr.bf16.mxu0 0
        %445 = vmatpush1.bf16.msra.mxu0 0
        %446 = vmatprep.subr.bf16.mxu0 0
        %447 = vmatpush1.bf16.msra.mxu0 %v428
        %448 = vmatprep.subr.bf16.mxu0 0
        %449 = vmatpush1.bf16.msra.mxu0 %v427
        %450 = vmatprep.subr.bf16.mxu0 0
        %451 = vmatpush2.bf16.msra.mxu0 0
        %452 = vmatprep.subr.bf16.mxu0 0
        %453 = vmatpush2.bf16.msra.mxu0 0
        %454 = vmatprep.subr.bf16.mxu0 0
        %455 = vmatpush2.bf16.msra.mxu0 0
        %456 = vmatprep.subr.bf16.mxu0 0
        %457 = vmatpush2.bf16.msra.mxu0 0
        %458 = vmatprep.subr.bf16.mxu0 0
        %459 = vmatpush2.bf16.msra.mxu0 0
        %460 = vmatprep.subr.bf16.mxu0 0
        %461 = vmatpush2.bf16.msra.mxu0 0
        %462 = vmatprep.subr.bf16.mxu0 0
        %463 = vmatpush2.bf16.msra.mxu0 0
        %464 = vmatprep.subr.bf16.mxu0 0
        %465 = vmatpush2.bf16.msra.mxu0 0
        %466 = vmatprep.mubr.bf16.mxu0 0
        %467 = vmatmul.mubr.bf16.gmra.mxu0 %v432
        %v468 = vpop.f32.mrf.mxu0
        %v469 = vadd.f32 0.0, %v468
        %v470 = vpop.f32.mrf.mxu0
        %v471 = vpop.f32.mrf.mxu0
        %v472 = vpop.f32.mrf.mxu0
        %473 = vdwg.mxu0
        %v474 = vpack.c.bf16 %v412, %v412
        %v475 = vld [vmem:[#allocation10] sm:$0xf]
        %v476 = vld [vmem:[#allocation10 + $0x4] sm:$0xf]
        %v477 = vld [vmem:[#allocation10 + $0x8] sm:$0xf]
        %v478 = vld [vmem:[#allocation10 + $0xc] sm:$0xf]
        %v483 = vunpack.c.l.b16 %v475
        %v484 = vunpack.c.l.b16 %v476
        %v485 = vunpack.c.l.b16 %v477
        %v486 = vunpack.c.l.b16 %v478
        %v487 = vpack.c.b16 %v484, %v483
        %v488 = vpack.c.b16 %v486, %v485
        %v492 = vsel %vm382, %v474, 0
        %494 = vmatprep.subr.bf16.mxu0 0
        %495 = vmatpush1.bf16.msra.mxu0 0
        %496 = vmatprep.subr.bf16.mxu0 0
        %497 = vmatpush1.bf16.msra.mxu0 0
        %498 = vmatprep.subr.bf16.mxu0 0
        %499 = vmatpush1.bf16.msra.mxu0 0
        %500 = vmatprep.subr.bf16.mxu0 0
        %501 = vmatpush1.bf16.msra.mxu0 0
        %502 = vmatprep.subr.bf16.mxu0 0
        %503 = vmatpush1.bf16.msra.mxu0 0
        %504 = vmatprep.subr.bf16.mxu0 0
        %505 = vmatpush1.bf16.msra.mxu0 0
        %506 = vmatprep.subr.bf16.mxu0 0
        %507 = vmatpush1.bf16.msra.mxu0 %v488
        %508 = vmatprep.subr.bf16.mxu0 0
        %509 = vmatpush1.bf16.msra.mxu0 %v487
        %510 = vmatprep.subr.bf16.mxu0 0
        %511 = vmatpush2.bf16.msra.mxu0 0
        %512 = vmatprep.subr.bf16.mxu0 0
        %513 = vmatpush2.bf16.msra.mxu0 0
        %514 = vmatprep.subr.bf16.mxu0 0
        %515 = vmatpush2.bf16.msra.mxu0 0
        %516 = vmatprep.subr.bf16.mxu0 0
        %517 = vmatpush2.bf16.msra.mxu0 0
        %518 = vmatprep.subr.bf16.mxu0 0
        %519 = vmatpush2.bf16.msra.mxu0 0
        %520 = vmatprep.subr.bf16.mxu0 0
        %521 = vmatpush2.bf16.msra.mxu0 0
        %522 = vmatprep.subr.bf16.mxu0 0
        %523 = vmatpush2.bf16.msra.mxu0 0
        %524 = vmatprep.subr.bf16.mxu0 0
        %525 = vmatpush2.bf16.msra.mxu0 0
        %526 = vmatprep.mubr.bf16.mxu0 0
        %527 = vmatmul.mubr.bf16.gmra.mxu0 %v492
        %v528 = vpop.f32.mrf.mxu0
        %v529 = vadd.f32 0.0, %v528
        %v530 = vpop.f32.mrf.mxu0
        %v531 = vpop.f32.mrf.mxu0
        %v532 = vpop.f32.mrf.mxu0
        %533 = vdwg.mxu0
        %v534 = vlaneseq
        %v535 = vand.u32 %v534, 127
        %s536 = sld [smem:[#allocation3 + %s33]]
        %v537 = vstv %s536
        %vm538 = vcmp.lt.s32.totalorder %v535, %v537
        %v539 = vsel %vm538, 0.0, -1e+09
        %v540 = vpack.c.bf16 %v469, %v469
        %v541 = vpack.c.bf16 %v529, %v529
        %543 = vrot.lane.b32.xlu0 %v540, 96
        %v544 = vpop.permute.xlu0 %543
        %vm545 = vcmask 64512
        %v547 = vsel %vm545, %v540, 0
        %v550 = vsel %vm545, %v544, 0
        %552 = vmatprep.subr.bf16.mxu0 0
        %553 = vmatpush1.bf16.xpose.msra.mxu0 0
        %554 = vmatprep.subr.bf16.mxu0 0
        %555 = vmatpush1.bf16.xpose.msra.mxu0 0
        %556 = vmatprep.subr.bf16.mxu0 0
        %557 = vmatpush1.bf16.xpose.msra.mxu0 0
        %558 = vmatprep.subr.bf16.mxu0 0
        %559 = vmatpush1.bf16.xpose.msra.mxu0 0
        %560 = vmatprep.subr.bf16.mxu0 0
        %561 = vmatpush1.bf16.xpose.msra.mxu0 0
        %562 = vmatprep.subr.bf16.mxu0 0
        %563 = vmatpush1.bf16.xpose.msra.mxu0 0
        %564 = vmatprep.subr.bf16.mxu0 0
        %565 = vmatpush1.bf16.xpose.msra.mxu0 0
        %566 = vmatprep.subr.bf16.mxu0 0
        %567 = vmatpush1.bf16.xpose.msra.mxu0 %v550
        %568 = vmatprep.subr.bf16.mxu0 0
        %569 = vmatpush2.bf16.xpose.msra.mxu0 0
        %570 = vmatprep.subr.bf16.mxu0 0
        %571 = vmatpush2.bf16.xpose.msra.mxu0 0
        %572 = vmatprep.subr.bf16.mxu0 0
        %573 = vmatpush2.bf16.xpose.msra.mxu0 0
        %574 = vmatprep.subr.bf16.mxu0 0
        %575 = vmatpush2.bf16.xpose.msra.mxu0 0
        %576 = vmatprep.subr.bf16.mxu0 0
        %577 = vmatpush2.bf16.xpose.msra.mxu0 0
        %578 = vmatprep.subr.bf16.mxu0 0
        %579 = vmatpush2.bf16.xpose.msra.mxu0 0
        %580 = vmatprep.subr.bf16.mxu0 0
        %581 = vmatpush2.bf16.xpose.msra.mxu0 0
        %582 = vmatprep.subr.bf16.mxu0 0
        %583 = vmatpush2.bf16.xpose.msra.mxu0 0
        %584 = vmatprep.mubr.bf16.mxu0 0
        %585 = vmatmul.mubr.bf16.gmra.mxu0 %v547
        %v586 = vpop.f32.mrf.mxu0
        %v587 = vadd.f32 0.0, %v586
        %v588 = vpop.f32.mrf.mxu0
        %v589 = vpop.f32.mrf.mxu0
        %v590 = vpop.f32.mrf.mxu0
        %591 = vdwg.mxu0
        %v592 = vmul.f32 %v587, 0.35355338
        %v593 = vadd.f32 %v592, %v539
        %v594 = vsel %vm545, %v593, -inf
        %595 = vmax.xlane.f32.xlu0 %v594
        %v596 = vpop.xlane.xlu0 %595
        %v597 = vsub.f32 %v593, %v596
        %v598 = vmul.f32 %v597, 1.442695
        %v599 = vpow.pop %v598
        %v600 = vsel %vm545, %v599, 0.0
        %601 = vadd.xlane.f32.xlu0 %v600
        %v602 = vpop.xlane.xlu0 %601
        %v603 = vrcp.pop %v602
        %v604 = vmul.f32 %v599, %v603
        %v605 = vpack.c.bf16 %v604, %v604
        %v607 = vsel %vm545, %v605, 0
        %vm609 = vcmask 1043456
        %v611 = vsel %vm609, %v541, 0
        %613 = vmatprep.subr.bf16.mxu0 0
        %614 = vmatpush1.bf16.msra.mxu0 0
        %615 = vmatprep.subr.bf16.mxu0 0
        %616 = vmatpush1.bf16.msra.mxu0 0
        %617 = vmatprep.subr.bf16.mxu0 0
        %618 = vmatpush1.bf16.msra.mxu0 0
        %619 = vmatprep.subr.bf16.mxu0 0
        %620 = vmatpush1.bf16.msra.mxu0 0
        %621 = vmatprep.subr.bf16.mxu0 0
        %622 = vmatpush1.bf16.msra.mxu0 0
        %623 = vmatprep.subr.bf16.mxu0 0
        %624 = vmatpush1.bf16.msra.mxu0 0
        %625 = vmatprep.subr.bf16.mxu0 0
        %626 = vmatpush1.bf16.msra.mxu0 0
        %627 = vmatprep.subr.bf16.mxu0 0
        %628 = vmatpush1.bf16.msra.mxu0 %v611
        %629 = vmatprep.subr.bf16.mxu0 0
        %630 = vmatpush2.bf16.msra.mxu0 0
        %631 = vmatprep.subr.bf16.mxu0 0
        %632 = vmatpush2.bf16.msra.mxu0 0
        %633 = vmatprep.subr.bf16.mxu0 0
        %634 = vmatpush2.bf16.msra.mxu0 0
        %635 = vmatprep.subr.bf16.mxu0 0
        %636 = vmatpush2.bf16.msra.mxu0 0
        %637 = vmatprep.subr.bf16.mxu0 0
        %638 = vmatpush2.bf16.msra.mxu0 0
        %639 = vmatprep.subr.bf16.mxu0 0
        %640 = vmatpush2.bf16.msra.mxu0 0
        %641 = vmatprep.subr.bf16.mxu0 0
        %642 = vmatpush2.bf16.msra.mxu0 0
        %643 = vmatprep.subr.bf16.mxu0 0
        %644 = vmatpush2.bf16.msra.mxu0 0
        %645 = vmatprep.mubr.bf16.mxu0 0
        %646 = vmatmul.mubr.bf16.gmra.mxu0 %v607
        %v647 = vpop.f32.mrf.mxu0
        %v648 = vadd.f32 0.0, %v647
        %v649 = vpop.f32.mrf.mxu0
        %v650 = vpop.f32.mrf.mxu0
        %v651 = vpop.f32.mrf.mxu0
        %652 = vdwg.mxu0
        %653 = vrot.lane.b32.xlu0 %v540, 120
        %v654 = vpop.permute.xlu0 %653
        %655 = vrot.lane.b32.xlu0 %v540, 88
        %v656 = vpop.permute.xlu0 %655
        %v658 = vsel %vm545, %v654, 0
        %v661 = vsel %vm545, %v656, 0
        %663 = vmatprep.subr.bf16.mxu0 0
        %664 = vmatpush1.bf16.xpose.msra.mxu0 0
        %665 = vmatprep.subr.bf16.mxu0 0
        %666 = vmatpush1.bf16.xpose.msra.mxu0 0
        %667 = vmatprep.subr.bf16.mxu0 0
        %668 = vmatpush1.bf16.xpose.msra.mxu0 0
        %669 = vmatprep.subr.bf16.mxu0 0
        %670 = vmatpush1.bf16.xpose.msra.mxu0 0
        %671 = vmatprep.subr.bf16.mxu0 0
        %672 = vmatpush1.bf16.xpose.msra.mxu0 0
        %673 = vmatprep.subr.bf16.mxu0 0
        %674 = vmatpush1.bf16.xpose.msra.mxu0 0
        %675 = vmatprep.subr.bf16.mxu0 0
        %676 = vmatpush1.bf16.xpose.msra.mxu0 0
        %677 = vmatprep.subr.bf16.mxu0 0
        %678 = vmatpush1.bf16.xpose.msra.mxu0 %v661
        %679 = vmatprep.subr.bf16.mxu0 0
        %680 = vmatpush2.bf16.xpose.msra.mxu0 0
        %681 = vmatprep.subr.bf16.mxu0 0
        %682 = vmatpush2.bf16.xpose.msra.mxu0 0
        %683 = vmatprep.subr.bf16.mxu0 0
        %684 = vmatpush2.bf16.xpose.msra.mxu0 0
        %685 = vmatprep.subr.bf16.mxu0 0
        %686 = vmatpush2.bf16.xpose.msra.mxu0 0
        %687 = vmatprep.subr.bf16.mxu0 0
        %688 = vmatpush2.bf16.xpose.msra.mxu0 0
        %689 = vmatprep.subr.bf16.mxu0 0
        %690 = vmatpush2.bf16.xpose.msra.mxu0 0
        %691 = vmatprep.subr.bf16.mxu0 0
        %692 = vmatpush2.bf16.xpose.msra.mxu0 0
        %693 = vmatprep.subr.bf16.mxu0 0
        %694 = vmatpush2.bf16.xpose.msra.mxu0 0
        %695 = vmatprep.mubr.bf16.mxu0 0
        %696 = vmatmul.mubr.bf16.gmra.mxu0 %v658
        %v697 = vpop.f32.mrf.mxu0
        %v698 = vadd.f32 0.0, %v697
        %v699 = vpop.f32.mrf.mxu0
        %v700 = vpop.f32.mrf.mxu0
        %v701 = vpop.f32.mrf.mxu0
        %702 = vdwg.mxu0
        %v703 = vmul.f32 %v698, 0.35355338
        %v704 = vadd.f32 %v703, %v539
        %v705 = vsel %vm545, %v704, -inf
        %706 = vmax.xlane.f32.xlu0 %v705
        %v707 = vpop.xlane.xlu0 %706
        %v708 = vsub.f32 %v704, %v707
        %v709 = vmul.f32 %v708, 1.442695
        %v710 = vpow.pop %v709
        %v711 = vsel %vm545, %v710, 0.0
        %712 = vadd.xlane.f32.xlu0 %v711
        %v713 = vpop.xlane.xlu0 %712
        %v714 = vrcp.pop %v713
        %v715 = vmul.f32 %v710, %v714
        %v716 = vpack.c.bf16 %v715, %v715
        %718 = vrot.lane.b32.xlu0 %v541, 120
        %v719 = vpop.permute.xlu0 %718
        %v721 = vsel %vm545, %v716, 0
        %v724 = vsel %vm609, %v719, 0
        %726 = vmatprep.subr.bf16.mxu0 0
        %727 = vmatpush1.bf16.msra.mxu0 0
        %728 = vmatprep.subr.bf16.mxu0 0
        %729 = vmatpush1.bf16.msra.mxu0 0
        %730 = vmatprep.subr.bf16.mxu0 0
        %731 = vmatpush1.bf16.msra.mxu0 0
        %732 = vmatprep.subr.bf16.mxu0 0
        %733 = vmatpush1.bf16.msra.mxu0 0
        %734 = vmatprep.subr.bf16.mxu0 0
        %735 = vmatpush1.bf16.msra.mxu0 0
        %736 = vmatprep.subr.bf16.mxu0 0
        %737 = vmatpush1.bf16.msra.mxu0 0
        %738 = vmatprep.subr.bf16.mxu0 0
        %739 = vmatpush1.bf16.msra.mxu0 0
        %740 = vmatprep.subr.bf16.mxu0 0
        %741 = vmatpush1.bf16.msra.mxu0 %v724
        %742 = vmatprep.subr.bf16.mxu0 0
        %743 = vmatpush2.bf16.msra.mxu0 0
        %744 = vmatprep.subr.bf16.mxu0 0
        %745 = vmatpush2.bf16.msra.mxu0 0
        %746 = vmatprep.subr.bf16.mxu0 0
        %747 = vmatpush2.bf16.msra.mxu0 0
        %748 = vmatprep.subr.bf16.mxu0 0
        %749 = vmatpush2.bf16.msra.mxu0 0
        %750 = vmatprep.subr.bf16.mxu0 0
        %751 = vmatpush2.bf16.msra.mxu0 0
        %752 = vmatprep.subr.bf16.mxu0 0
        %753 = vmatpush2.bf16.msra.mxu0 0
        %754 = vmatprep.subr.bf16.mxu0 0
        %755 = vmatpush2.bf16.msra.mxu0 0
        %756 = vmatprep.subr.bf16.mxu0 0
        %757 = vmatpush2.bf16.msra.mxu0 0
        %758 = vmatprep.mubr.bf16.mxu0 0
        %759 = vmatmul.mubr.bf16.gmra.mxu0 %v721
        %v760 = vpop.f32.mrf.mxu0
        %v761 = vadd.f32 0.0, %v760
        %v762 = vpop.f32.mrf.mxu0
        %v763 = vpop.f32.mrf.mxu0
        %v764 = vpop.f32.mrf.mxu0
        %765 = vdwg.mxu0
        %766 = vrot.lane.b32.xlu0 %v540, 112
        %v767 = vpop.permute.xlu0 %766
        %768 = vrot.lane.b32.xlu0 %v540, 80
        %v769 = vpop.permute.xlu0 %768
        %v771 = vsel %vm545, %v767, 0
        %v774 = vsel %vm545, %v769, 0
        %776 = vmatprep.subr.bf16.mxu0 0
        %777 = vmatpush1.bf16.xpose.msra.mxu0 0
        %778 = vmatprep.subr.bf16.mxu0 0
        %779 = vmatpush1.bf16.xpose.msra.mxu0 0
        %780 = vmatprep.subr.bf16.mxu0 0
        %781 = vmatpush1.bf16.xpose.msra.mxu0 0
        %782 = vmatprep.subr.bf16.mxu0 0
        %783 = vmatpush1.bf16.xpose.msra.mxu0 0
        %784 = vmatprep.subr.bf16.mxu0 0
        %785 = vmatpush1.bf16.xpose.msra.mxu0 0
        %786 = vmatprep.subr.bf16.mxu0 0
        %787 = vmatpush1.bf16.xpose.msra.mxu0 0
        %788 = vmatprep.subr.bf16.mxu0 0
        %789 = vmatpush1.bf16.xpose.msra.mxu0 0
        %790 = vmatprep.subr.bf16.mxu0 0
        %791 = vmatpush1.bf16.xpose.msra.mxu0 %v774
        %792 = vmatprep.subr.bf16.mxu0 0
        %793 = vmatpush2.bf16.xpose.msra.mxu0 0
        %794 = vmatprep.subr.bf16.mxu0 0
        %795 = vmatpush2.bf16.xpose.msra.mxu0 0
        %796 = vmatprep.subr.bf16.mxu0 0
        %797 = vmatpush2.bf16.xpose.msra.mxu0 0
        %798 = vmatprep.subr.bf16.mxu0 0
        %799 = vmatpush2.bf16.xpose.msra.mxu0 0
        %800 = vmatprep.subr.bf16.mxu0 0
        %801 = vmatpush2.bf16.xpose.msra.mxu0 0
        %802 = vmatprep.subr.bf16.mxu0 0
        %803 = vmatpush2.bf16.xpose.msra.mxu0 0
        %804 = vmatprep.subr.bf16.mxu0 0
        %805 = vmatpush2.bf16.xpose.msra.mxu0 0
        %806 = vmatprep.subr.bf16.mxu0 0
        %807 = vmatpush2.bf16.xpose.msra.mxu0 0
        %808 = vmatprep.mubr.bf16.mxu0 0
        %809 = vmatmul.mubr.bf16.gmra.mxu0 %v771
        %v810 = vpop.f32.mrf.mxu0
        %v811 = vadd.f32 0.0, %v810
        %v812 = vpop.f32.mrf.mxu0
        %v813 = vpop.f32.mrf.mxu0
        %v814 = vpop.f32.mrf.mxu0
        %815 = vdwg.mxu0
        %v816 = vmul.f32 %v811, 0.35355338
        %v817 = vadd.f32 %v816, %v539
        %v818 = vsel %vm545, %v817, -inf
        %819 = vmax.xlane.f32.xlu0 %v818
        %v820 = vpop.xlane.xlu0 %819
        %v821 = vsub.f32 %v817, %v820
        %v822 = vmul.f32 %v821, 1.442695
        %v823 = vpow.pop %v822
        %v824 = vsel %vm545, %v823, 0.0
        %825 = vadd.xlane.f32.xlu0 %v824
        %v826 = vpop.xlane.xlu0 %825
        %v827 = vrcp.pop %v826
        %v828 = vmul.f32 %v823, %v827
        %v829 = vpack.c.bf16 %v828, %v828
        %830 = vrot.lane.b32.xlu0 %v541, 112
        %v831 = vpop.permute.xlu0 %830
        %v833 = vsel %vm545, %v829, 0
        %v836 = vsel %vm609, %v831, 0
        %838 = vmatprep.subr.bf16.mxu0 0
        %839 = vmatpush1.bf16.msra.mxu0 0
        %840 = vmatprep.subr.bf16.mxu0 0
        %841 = vmatpush1.bf16.msra.mxu0 0
        %842 = vmatprep.subr.bf16.mxu0 0
        %843 = vmatpush1.bf16.msra.mxu0 0
        %844 = vmatprep.subr.bf16.mxu0 0
        %845 = vmatpush1.bf16.msra.mxu0 0
        %846 = vmatprep.subr.bf16.mxu0 0
        %847 = vmatpush1.bf16.msra.mxu0 0
        %848 = vmatprep.subr.bf16.mxu0 0
        %849 = vmatpush1.bf16.msra.mxu0 0
        %850 = vmatprep.subr.bf16.mxu0 0
        %851 = vmatpush1.bf16.msra.mxu0 0
        %852 = vmatprep.subr.bf16.mxu0 0
        %853 = vmatpush1.bf16.msra.mxu0 %v836
        %854 = vmatprep.subr.bf16.mxu0 0
        %855 = vmatpush2.bf16.msra.mxu0 0
        %856 = vmatprep.subr.bf16.mxu0 0
        %857 = vmatpush2.bf16.msra.mxu0 0
        %858 = vmatprep.subr.bf16.mxu0 0
        %859 = vmatpush2.bf16.msra.mxu0 0
        %860 = vmatprep.subr.bf16.mxu0 0
        %861 = vmatpush2.bf16.msra.mxu0 0
        %862 = vmatprep.subr.bf16.mxu0 0
        %863 = vmatpush2.bf16.msra.mxu0 0
        %864 = vmatprep.subr.bf16.mxu0 0
        %865 = vmatpush2.bf16.msra.mxu0 0
        %866 = vmatprep.subr.bf16.mxu0 0
        %867 = vmatpush2.bf16.msra.mxu0 0
        %868 = vmatprep.subr.bf16.mxu0 0
        %869 = vmatpush2.bf16.msra.mxu0 0
        %870 = vmatprep.mubr.bf16.mxu0 0
        %871 = vmatmul.mubr.bf16.gmra.mxu0 %v833
        %v872 = vpop.f32.mrf.mxu0
        %v873 = vadd.f32 0.0, %v872
        %v874 = vpop.f32.mrf.mxu0
        %v875 = vpop.f32.mrf.mxu0
        %v876 = vpop.f32.mrf.mxu0
        %877 = vdwg.mxu0
        %878 = vrot.lane.b32.xlu0 %v540, 104
        %v879 = vpop.permute.xlu0 %878
        %880 = vrot.lane.b32.xlu0 %v540, 72
        %v881 = vpop.permute.xlu0 %880
        %v883 = vsel %vm545, %v879, 0
        %v886 = vsel %vm545, %v881, 0
        %888 = vmatprep.subr.bf16.mxu0 0
        %889 = vmatpush1.bf16.xpose.msra.mxu0 0
        %890 = vmatprep.subr.bf16.mxu0 0
        %891 = vmatpush1.bf16.xpose.msra.mxu0 0
        %892 = vmatprep.subr.bf16.mxu0 0
        %893 = vmatpush1.bf16.xpose.msra.mxu0 0
        %894 = vmatprep.subr.bf16.mxu0 0
        %895 = vmatpush1.bf16.xpose.msra.mxu0 0
        %896 = vmatprep.subr.bf16.mxu0 0
        %897 = vmatpush1.bf16.xpose.msra.mxu0 0
        %898 = vmatprep.subr.bf16.mxu0 0
        %899 = vmatpush1.bf16.xpose.msra.mxu0 0
        %900 = vmatprep.subr.bf16.mxu0 0
        %901 = vmatpush1.bf16.xpose.msra.mxu0 0
        %902 = vmatprep.subr.bf16.mxu0 0
        %903 = vmatpush1.bf16.xpose.msra.mxu0 %v886
        %904 = vmatprep.subr.bf16.mxu0 0
        %905 = vmatpush2.bf16.xpose.msra.mxu0 0
        %906 = vmatprep.subr.bf16.mxu0 0
        %907 = vmatpush2.bf16.xpose.msra.mxu0 0
        %908 = vmatprep.subr.bf16.mxu0 0
        %909 = vmatpush2.bf16.xpose.msra.mxu0 0
        %910 = vmatprep.subr.bf16.mxu0 0
        %911 = vmatpush2.bf16.xpose.msra.mxu0 0
        %912 = vmatprep.subr.bf16.mxu0 0
        %913 = vmatpush2.bf16.xpose.msra.mxu0 0
        %914 = vmatprep.subr.bf16.mxu0 0
        %915 = vmatpush2.bf16.xpose.msra.mxu0 0
        %916 = vmatprep.subr.bf16.mxu0 0
        %917 = vmatpush2.bf16.xpose.msra.mxu0 0
        %918 = vmatprep.subr.bf16.mxu0 0
        %919 = vmatpush2.bf16.xpose.msra.mxu0 0
        %920 = vmatprep.mubr.bf16.mxu0 0
        %921 = vmatmul.mubr.bf16.gmra.mxu0 %v883
        %v922 = vpop.f32.mrf.mxu0
        %v923 = vadd.f32 0.0, %v922
        %v924 = vpop.f32.mrf.mxu0
        %v925 = vpop.f32.mrf.mxu0
        %v926 = vpop.f32.mrf.mxu0
        %927 = vdwg.mxu0
        %v928 = vmul.f32 %v923, 0.35355338
        %v929 = vadd.f32 %v928, %v539
        %v930 = vsel %vm545, %v929, -inf
        %931 = vmax.xlane.f32.xlu0 %v930
        %v932 = vpop.xlane.xlu0 %931
        %v933 = vsub.f32 %v929, %v932
        %v934 = vmul.f32 %v933, 1.442695
        %v935 = vpow.pop %v934
        %v936 = vsel %vm545, %v935, 0.0
        %937 = vadd.xlane.f32.xlu0 %v936
        %v938 = vpop.xlane.xlu0 %937
        %v939 = vrcp.pop %v938
        %v940 = vmul.f32 %v935, %v939
        %v941 = vpack.c.bf16 %v940, %v940
        %942 = vrot.lane.b32.xlu0 %v541, 104
        %v943 = vpop.permute.xlu0 %942
        %v945 = vsel %vm545, %v941, 0
        %v948 = vsel %vm609, %v943, 0
        %950 = vmatprep.subr.bf16.mxu0 0
        %951 = vmatpush1.bf16.msra.mxu0 0
        %952 = vmatprep.subr.bf16.mxu0 0
        %953 = vmatpush1.bf16.msra.mxu0 0
        %954 = vmatprep.subr.bf16.mxu0 0
        %955 = vmatpush1.bf16.msra.mxu0 0
        %956 = vmatprep.subr.bf16.mxu0 0
        %957 = vmatpush1.bf16.msra.mxu0 0
        %958 = vmatprep.subr.bf16.mxu0 0
        %959 = vmatpush1.bf16.msra.mxu0 0
        %960 = vmatprep.subr.bf16.mxu0 0
        %961 = vmatpush1.bf16.msra.mxu0 0
        %962 = vmatprep.subr.bf16.mxu0 0
        %963 = vmatpush1.bf16.msra.mxu0 0
        %964 = vmatprep.subr.bf16.mxu0 0
        %965 = vmatpush1.bf16.msra.mxu0 %v948
        %966 = vmatprep.subr.bf16.mxu0 0
        %967 = vmatpush2.bf16.msra.mxu0 0
        %968 = vmatprep.subr.bf16.mxu0 0
        %969 = vmatpush2.bf16.msra.mxu0 0
        %970 = vmatprep.subr.bf16.mxu0 0
        %971 = vmatpush2.bf16.msra.mxu0 0
        %972 = vmatprep.subr.bf16.mxu0 0
        %973 = vmatpush2.bf16.msra.mxu0 0
        %974 = vmatprep.subr.bf16.mxu0 0
        %975 = vmatpush2.bf16.msra.mxu0 0
        %976 = vmatprep.subr.bf16.mxu0 0
        %977 = vmatpush2.bf16.msra.mxu0 0
        %978 = vmatprep.subr.bf16.mxu0 0
        %979 = vmatpush2.bf16.msra.mxu0 0
        %980 = vmatprep.subr.bf16.mxu0 0
        %981 = vmatpush2.bf16.msra.mxu0 0
        %982 = vmatprep.mubr.bf16.mxu0 0
        %983 = vmatmul.mubr.bf16.gmra.mxu0 %v945
        %v984 = vpop.f32.mrf.mxu0
        %v985 = vadd.f32 0.0, %v984
        %v986 = vpop.f32.mrf.mxu0
        %v987 = vpop.f32.mrf.mxu0
        %v988 = vpop.f32.mrf.mxu0
        %989 = vdwg.mxu0
        %991 = vrot.lane.b32.xlu0 %v761, 8
        %v992 = vpop.permute.xlu0 %991
        %995 = vrot.lane.b32.xlu0 %v873, 16
        %v996 = vpop.permute.xlu0 %995
        %999 = vrot.lane.b32.xlu0 %v985, 24
        %v1000 = vpop.permute.xlu0 %999
        %v1002 = vsel %vm545, %v648, %v992
        %vm1003 = vcmask 130048
        %v1004 = vsel %vm1003, %v1002, %v996
        %vm1005 = vcmask 195584
        %v1006 = vsel %vm1005, %v1004, %v1000
        %v1007 = vpack.c.bf16 %v1006, %v1006
        %v1008 = vld [vmem:[#allocation12] sm:$0xf]
        %v1009 = vld [vmem:[#allocation12 + $0x4] sm:$0xf]
        %v1010 = vld [vmem:[#allocation12 + $0x8] sm:$0xf]
        %v1011 = vld [vmem:[#allocation12 + $0xc] sm:$0xf]
        %v1016 = vunpack.c.l.b16 %v1008
        %v1017 = vunpack.c.l.b16 %v1009
        %v1018 = vunpack.c.l.b16 %v1010
        %v1019 = vunpack.c.l.b16 %v1011
        %v1020 = vpack.c.b16 %v1017, %v1016
        %v1021 = vpack.c.b16 %v1019, %v1018
        %v1025 = vsel %vm382, %v1007, 0
        %1027 = vmatprep.subr.bf16.mxu0 0
        %1028 = vmatpush1.bf16.msra.mxu0 0
        %1029 = vmatprep.subr.bf16.mxu0 0
        %1030 = vmatpush1.bf16.msra.mxu0 0
        %1031 = vmatprep.subr.bf16.mxu0 0
        %1032 = vmatpush1.bf16.msra.mxu0 0
        %1033 = vmatprep.subr.bf16.mxu0 0
        %1034 = vmatpush1.bf16.msra.mxu0 0
        %1035 = vmatprep.subr.bf16.mxu0 0
        %1036 = vmatpush1.bf16.msra.mxu0 0
        %1037 = vmatprep.subr.bf16.mxu0 0
        %1038 = vmatpush1.bf16.msra.mxu0 0
        %1039 = vmatprep.subr.bf16.mxu0 0
        %1040 = vmatpush1.bf16.msra.mxu0 %v1021
        %1041 = vmatprep.subr.bf16.mxu0 0
        %1042 = vmatpush1.bf16.msra.mxu0 %v1020
        %1043 = vmatprep.subr.bf16.mxu0 0
        %1044 = vmatpush2.bf16.msra.mxu0 0
        %1045 = vmatprep.subr.bf16.mxu0 0
        %1046 = vmatpush2.bf16.msra.mxu0 0
        %1047 = vmatprep.subr.bf16.mxu0 0
        %1048 = vmatpush2.bf16.msra.mxu0 0
        %1049 = vmatprep.subr.bf16.mxu0 0
        %1050 = vmatpush2.bf16.msra.mxu0 0
        %1051 = vmatprep.subr.bf16.mxu0 0
        %1052 = vmatpush2.bf16.msra.mxu0 0
        %1053 = vmatprep.subr.bf16.mxu0 0
        %1054 = vmatpush2.bf16.msra.mxu0 0
        %1055 = vmatprep.subr.bf16.mxu0 0
        %1056 = vmatpush2.bf16.msra.mxu0 0
        %1057 = vmatprep.subr.bf16.mxu0 0
        %1058 = vmatpush2.bf16.msra.mxu0 0
        %1059 = vmatprep.mubr.bf16.mxu0 0
        %1060 = vmatmul.mubr.bf16.gmra.mxu0 %v1025
        %v1061 = vpop.f32.mrf.mxu0
        %v1062 = vadd.f32 0.0, %v1061
        %v1063 = vpop.f32.mrf.mxu0
        %v1064 = vpop.f32.mrf.mxu0
        %v1065 = vpop.f32.mrf.mxu0
        %1066 = vdwg.mxu0
        %v1067 = vadd.f32 %v380, %v1062
        %1068 = vst.msk [vmem:[%s378] sm:$0xff] %vm382, %v1067
        %s1069 = sand.u32 %s198, 1
        %s1070 = scalar_lea.sflag [#allocation6], %s1069
        %s1071 = sand.u32 %s198, 1
        %s1072 = smul.addr %s1071, 8
        %s1073 = scalar_lea.vmem [#allocation13], %s1072
        // Predicated region
        $region69: #{tpu_custom_call.1} parent=47 // pred_check
          %p1074 = pneg %p208
        $region70: #{tpu_custom_call.1} parent=47 // pred_check_branch
          %1076 = sbr.rel (%p1074) target = $region72
        $region71: #{tpu_custom_call.1} parent=47 // pred_region
          %s1078 = ssub.s32 128, 128
          %1079 = vsyncadd %s1070, %s1078
          %s1080 = smul.addr %s33, 128
          %s1081 = scalar_lea.hbm %s8, %s1080
          %s1083 = sshll.u32 %s1073, 4
          %s1084 = int_to_ptr.vmem [resolvable:$true] %s1083
          %1086 = dma.vmem_to_hbm [thread:$0]  %s1084, 128, %s1081, %s1070
        $region72: #{tpu_custom_call.1} parent=47 // pred_fallthru
          _
      $region48: #{tpu_custom_call.1} parent=5 // pred_fallthru
        _
      %p1087 = scmp.le.s32.totalorder 2, %s28
      // Predicated region
      $region73: #{tpu_custom_call.1} parent=5 // pred_check
        %p1088 = pneg %p1087
      $region74: #{tpu_custom_call.1} parent=5 // pred_check_branch
        %1090 = sbr.rel (%p1088) target = $region76
      $region75: #{tpu_custom_call.1} parent=5 // pred_region
        %s1091 = ssub.s32 %s28, 2
        // Predicated region
        $region77: #{tpu_custom_call.1} parent=75 // pred_check
          %p1092 = pneg %p214
        $region78: #{tpu_custom_call.1} parent=75 // pred_check_branch
          %1094 = sbr.rel (%p1092) target = $region80
        $region79: #{tpu_custom_call.1} parent=75 // pred_region
          %s1095 = sand.u32 %s199, 1
          %s1096 = scalar_lea.sflag [#allocation6], %s1095
          %s1097 = sand.u32 %s199, 1
          %s1098 = smul.addr %s1097, 8
          %s1099 = scalar_lea.vmem [#allocation13], %s1098
          %1100 = dma.done %s1096, 128
        $region80: #{tpu_custom_call.1} parent=75 // pred_fallthru
          _
      $region76: #{tpu_custom_call.1} parent=5 // pred_fallthru
        _
    $region6: #{tpu_custom_call.1} parent=1 // loop_footer
      %s32 = sadd.s32 1, %s28
    $region7: #{tpu_custom_call.1} parent=1 // loop_footer_branch
      %27 = sbr.rel target = $region3
    $region8: #{tpu_custom_call.1} parent=1 // loop_exit
      _
    %1101 = vsyncpa [#allocation5], 1
    %s1102 = scalar_lea.sflag [#allocation5], 1
    %1103 = vsyncpa %s1102, 1
    %1104 = vsyncpa [#allocation8], 1
    %s1105 = scalar_lea.sflag [#allocation8], 1
    %1106 = vsyncpa %s1105, 1
    %1107 = vsyncpa [#allocation11], 1
    %1108 = vsyncpa [#allocation6], 1
    %s1109 = scalar_lea.sflag [#allocation6], 1
    %1110 = vsyncpa %s1109, 1

</llo_original>
